<compile_context>
chip_gen: v7x
topology: tpu7x:2x2x1
jax: 0.10.0
libtpu: 0.0.40
codegen_flags: <defaults>
</compile_context>

<pallas_src>
import functools
import numpy as np
import jax
import jax.numpy as jnp
from jax.experimental import pallas as pl
from jax.experimental.pallas import tpu as pltpu


def _round_up(x, m):
    return int(-(-int(x) // m) * m)


def _mxu_pad(d):
    # 128-lane alignment for small dims; 256 for larger ones so the 256-wide
    # v6e/v7x MXU tiles are filled (v5e's 128-wide MXU is already saturated).
    return _round_up(d, 128) if d <= 128 else _round_up(d, 256)


_HAS_BUFFERED = hasattr(pl, "Buffered")


# ---------------------------------------------------------------------------
# Fused kernel: max-pool reduce over the k pre-strided slices + 3 matmuls.
# ---------------------------------------------------------------------------
def _make_fused_kernel(k):
    def kernel(x_ref, w0_ref, w1_ref, w2_ref, out_ref):
        # x_ref: (k, TM, Dp) lane-dense packed features; max over k == ceil-mode
        # MaxPool1d for every group (stat lanes are replicated across k,
        # constant-1 bias lane is 1 in every slice, padded lanes are 0).
        if k == 1:
            feat = x_ref[0]
        elif k < 8:
            feat = x_ref[0]
            for i in range(1, k):
                feat = jnp.maximum(feat, x_ref[i])
        else:
            feat = jnp.max(x_ref[...], axis=0)     # bounded live ranges, VPU filler

        # Biases are folded into the weights via the constant-1 lane/column.
        h0 = jnp.dot(feat, w0_ref[...], preferred_element_type=jnp.float32)
        h1 = jnp.dot(h0, w1_ref[...], preferred_element_type=jnp.float32)
        h1 = jnp.maximum(h1, 0.0)                  # ReLU
        out_ref[...] = jnp.dot(
            h1, w2_ref[...], preferred_element_type=jnp.float32
        ).astype(out_ref.dtype)

    return kernel


# ---------------------------------------------------------------------------
# NHITSBlock wrapper
# ---------------------------------------------------------------------------
class NHITSBlockPallas:
    def __init__(self, input_size, h, n_theta, mlp_units,
                 futr_exog_size, hist_exog_size, stat_exog_size,
                 n_pool_kernel_size, key,
                 pooling_mode="MaxPool1d", activation="ReLU", dropout_prob=0.0):
        # TODO(synk): only the 3-Linear config (len(mlp_units)==1), ReLU,
        # MaxPool1d and an Identity basis are implemented.
        assert len(mlp_units) == 1
        assert pooling_mode == "MaxPool1d"
        assert activation == "ReLU"
        assert dropout_prob == 0.0   # reference raises NotImplementedError too

        self.input_size = input_size
        self.h = h
        self.n_theta = n_theta
        self.k = int(n_pool_kernel_size)
        self.futr_exog_size = futr_exog_size
        self.hist_exog_size = hist_exog_size
        self.stat_exog_size = stat_exog_size

        self.pooled_hist = int(np.ceil(input_size / self.k))
        self.pooled_futr = int(np.ceil((input_size + h) / self.k))
        d_in = (self.pooled_hist
                + hist_exog_size * self.pooled_hist
                + futr_exog_size * self.pooled_futr
                + stat_exog_size)
        self.d_in = d_in

        H0 = mlp_units[0][0]
        H1 = mlp_units[-1][1]

        ks = jax.random.split(key, 6)

        def init_linear(kw, kb, fan_in, fan_out):
            bound = 1.0 / np.sqrt(fan_in)
            w = jax.random.uniform(kw, (fan_in, fan_out), jnp.float32, -bound, bound)
            b = jax.random.uniform(kb, (1, fan_out), jnp.float32, -bound, bound)
            return w, b

        w0, b0 = init_linear(ks[0], ks[1], d_in, H0)
        w1, b1 = init_linear(ks[2], ks[3], H0, H1)
        w2, b2 = init_linear(ks[4], ks[5], H1, n_theta)
        self.params_ref = (w0, b0, w1, b1, w2, b2)     # unpadded (reference check)

        # ---- fused, padded, bias-folded weights -------------------------------
        # Single lane-dense K axis for the first matmul: all feature groups
        # concatenated + one constant-1 lane that carries b0 and propagates a
        # "1" column through the MLP so b1/b2 ride inside w1/w2 as extra rows.
        self.Dp = _mxu_pad(d_in + 1)
        self.H0p = _mxu_pad(H0 + 1)
        self.H1p = _mxu_pad(H1 + 1)
        self.Np = _mxu_pad(n_theta)

        w0p = jnp.zeros((self.Dp, self.H0p), jnp.float32)
        w0p = w0p.at[:d_in, :H0].set(w0)
        w0p = w0p.at[d_in, :H0].set(b0[0])
        w0p = w0p.at[d_in, H0].set(1.0)            # keep a 1-column in h0

        w1p = jnp.zeros((self.H0p, self.H1p), jnp.float32)
        w1p = w1p.at[:H0, :H1].set(w1)
        w1p = w1p.at[H0, :H1].set(b1[0])
        w1p = w1p.at[H0, H1].set(1.0)              # keep a 1-column in h1 (ReLU(1)=1)

        w2p = jnp.zeros((self.H1p, self.Np), jnp.float32)
        w2p = w2p.at[:H1, :n_theta].set(w2)
        w2p = w2p.at[H1, :n_theta].set(b2[0])

        # TODO(synk): bf16 resident weights (halves weight VMEM, ~2x v6e/v7x MXU
        # throughput) not enabled to keep the f32 reference tolerance.
        self.w0p, self.w1p, self.w2p = w0p, w1p, w2p

        self._single_buffer_weights = _HAS_BUFFERED
        self._jit_forward = None

    # ------------------------------------------------------------------ tiling
    @staticmethod
    def _pick_tiling(B):
        if B < 16:
            TM = _round_up(max(B, 1), 8)       # one tile; too small to split
        else:
            # Big tiles (per-grid-step overhead ~0.35us) but keep >=2 grid steps
            # so the "parallel" batch axis can shard across v7x's two TCs.
            TM = min(1024, _round_up(-(-B // 2), 8))
        B_pad = _round_up(B, TM)
        return TM, B_pad

    # ---------------------------------------------------------------- forward
    def _forward_impl(self, single_buffer_weights, w0p, w1p, w2p,
                      insample_y, futr_exog, hist_exog, stat_exog):
        k = self.k
        B = insample_y.shape[0]

        # Host-side layout plumbing (pad to ceil-mode window, pre-stride by k).
        # All of this is inside jit, so XLA fuses it into one prep pass.
        def window_series(y, P):                       # [B, L] -> [k, B, P]
            y = y.astype(jnp.float32)
            pad_t = P * k - y.shape[1]
            if pad_t:
                y = jnp.pad(y, ((0, 0), (0, pad_t)), constant_values=-jnp.inf)
            return jnp.transpose(y.reshape(B, P, k), (2, 0, 1))

        def window_exog(x, P):                         # [B, L, C] -> [k, B, P*C]
            Bx, L, C = x.shape
            x = x.astype(jnp.float32)
            pad_t = P * k - L
            if pad_t:
                x = jnp.pad(x, ((0, 0), (0, pad_t), (0, 0)),
                            constant_values=-jnp.inf)
            # flatten order (p, c) matches permute/pool/permute/reshape
            return jnp.transpose(x.reshape(Bx, P, k, C),
                                 (2, 0, 1, 3)).reshape(k, Bx, P * C)

        parts = [window_series(insample_y, self.pooled_hist)]
        if self.hist_exog_size > 0:
            parts.append(window_exog(hist_exog, self.pooled_hist))
        if self.futr_exog_size > 0:
            parts.append(window_exog(futr_exog, self.pooled_futr))
        if self.stat_exog_size > 0:
            s = stat_exog.astype(jnp.float32).reshape(B, -1)
            parts.append(jnp.broadcast_to(s[None], (k, B, s.shape[1])))
        parts.append(jnp.ones((k, B, 1), jnp.float32))  # constant-1 bias lane

        packed = jnp.concatenate(parts, axis=-1)        # [k, B, d_in+1]
        TM, B_pad = self._pick_tiling(B)
        # NOTE: lane padding MUST be 0 (not -inf) -> zero W0 rows, no NaN.
        packed = jnp.pad(packed, ((0, 0), (0, B_pad - B),
                                  (0, self.Dp - packed.shape[-1])))

        grid = (B_pad // TM,)

        wmode = {}
        if single_buffer_weights:
            # Constant index_map -> the second buffer is pure VMEM waste.
            wmode = dict(pipeline_mode=pl.Buffered(1))
        in_specs = [
            pl.BlockSpec((k, TM, self.Dp), lambda i: (0, i, 0)),
            pl.BlockSpec((self.Dp, self.H0p), lambda i: (0, 0), **wmode),
            pl.BlockSpec((self.H0p, self.H1p), lambda i: (0, 0), **wmode),
            pl.BlockSpec((self.H1p, self.Np), lambda i: (0, 0), **wmode),
        ]

        w_bufs = 1 if single_buffer_weights else 2
        est = (2 * k * TM * self.Dp
               + w_bufs * (self.Dp * self.H0p + self.H0p * self.H1p
                           + self.H1p * self.Np)
               + 2 * TM * self.Np + TM * (self.H0p + self.H1p)) * 4
        # Explicit scoped-VMEM limit (v5e default is only 16 MiB); cap at the
        # v7x 64 MiB physical VMEM so the request is valid on every generation.
        vmem_limit = int(min(max(2 * est, 32 << 20), 64 << 20))

        theta_pad = pl.pallas_call(
            _make_fused_kernel(k),
            out_shape=jax.ShapeDtypeStruct((B_pad, self.Np), jnp.float32),
            grid=grid,
            in_specs=in_specs,
            out_specs=pl.BlockSpec((TM, self.Np), lambda i: (i, 0)),
            compiler_params=pltpu.CompilerParams(
                dimension_semantics=("parallel",),
                vmem_limit_bytes=vmem_limit),
        )(packed, w0p, w1p, w2p)

        theta = theta_pad[:B, : self.n_theta]
        # Identity basis
        return theta[:, : self.input_size], theta[:, self.input_size:]

    def __call__(self, insample_y, futr_exog, hist_exog, stat_exog):
        args = (self.w0p, self.w1p, self.w2p,
                insample_y, futr_exog, hist_exog, stat_exog)
        if self._jit_forward is None:
            self._jit_forward = jax.jit(functools.partial(
                self._forward_impl, self._single_buffer_weights))
        try:
            return self._jit_forward(*args)
        except Exception:
            if not self._single_buffer_weights:
                raise
            # Fallback if this jax/Mosaic build rejects pl.Buffered(1).
            self._single_buffer_weights = False
            self._jit_forward = jax.jit(
                functools.partial(self._forward_impl, False))
            return self._jit_forward(*args)


# ---------------------------------------------------------------------------
# Pure-JAX reference (unpadded params) for correctness check
# ---------------------------------------------------------------------------
def reference_forward(block, insample_y, futr_exog, hist_exog, stat_exog):
    k = block.k

    def pool2d(x):
        R, L = x.shape
        P = int(np.ceil(L / k))
        pad = P * k - L
        if pad:
            x = jnp.pad(x, ((0, 0), (0, pad)), constant_values=-jnp.inf)
        return jnp.max(x.reshape(R, P, k), axis=-1)

    B = insample_y.shape[0]
    feats = [pool2d(insample_y.astype(jnp.float32))]
    for exog, size in ((hist_exog, block.hist_exog_size),
                       (futr_exog, block.futr_exog_size)):
        if size > 0:
            Bx, L, C = exog.shape
            x = jnp.transpose(exog.astype(jnp.float32), (0, 2, 1)).reshape(Bx * C, L)
            p = pool2d(x)
            p = jnp.transpose(p.reshape(Bx, C, -1), (0, 2, 1)).reshape(Bx, -1)
            feats.append(p)
    if block.stat_exog_size > 0:
        feats.append(stat_exog.astype(jnp.float32).reshape(B, -1))
    x = jnp.concatenate(feats, axis=1)

    w0, b0, w1, b1, w2, b2 = block.params_ref
    h0 = x @ w0 + b0
    h1 = jnp.maximum(h0 @ w1 + b1, 0.0)
    theta = h1 @ w2 + b2
    return theta[:, : block.input_size], theta[:, block.input_size:]


# ---------------------------------------------------------------------------
# Main
# ---------------------------------------------------------------------------
if __name__ == "__main__":
    B = 20                      # exercises batch padding AND a 2-step grid
    input_size = 16
    h = 8
    n_pool_kernel_size = 2
    futr_exog_size = 2
    hist_exog_size = 3
    stat_exog_size = 4
    mlp_units = [[32, 32]]
    n_theta = input_size + h    # Identity basis: backcast | forecast

    key = jax.random.PRNGKey(0)
    k_params, k_y, k_f, k_hx, k_s = jax.random.split(key, 5)

    block = NHITSBlockPallas(
        input_size=input_size, h=h, n_theta=n_theta, mlp_units=mlp_units,
        futr_exog_size=futr_exog_size, hist_exog_size=hist_exog_size,
        stat_exog_size=stat_exog_size, n_pool_kernel_size=n_pool_kernel_size,
        key=k_params)

    insample_y = jax.random.normal(k_y, (B, input_size), jnp.float32)
    futr_exog = jax.random.normal(k_f, (B, input_size + h, futr_exog_size), jnp.float32)
    hist_exog = jax.random.normal(k_hx, (B, input_size, hist_exog_size), jnp.float32)
    stat_exog = jax.random.normal(k_s, (B, stat_exog_size), jnp.float32)

    backcast, forecast = block(insample_y, futr_exog, hist_exog, stat_exog)
    jax.block_until_ready((backcast, forecast))

    ref_back, ref_fore = reference_forward(block, insample_y, futr_exog,
                                           hist_exog, stat_exog)
    np.testing.assert_allclose(np.asarray(backcast), np.asarray(ref_back),
                               rtol=2e-5, atol=2e-5)
    np.testing.assert_allclose(np.asarray(forecast), np.asarray(ref_fore),
                               rtol=2e-5, atol=2e-5)

    assert backcast.shape == (B, input_size) and forecast.shape == (B, h)
    print("KERNEL_OK")
</pallas_src>

<mosaic_0001>
module attributes {stable_mosaic.version = 11 : i64} {
  func.func @kernel(%arg0: i32, %arg1: memref<2x16x128xf32, #tpu.memory_space<vmem>>, %arg2: memref<128x128xf32, #tpu.memory_space<vmem>>, %arg3: memref<128x128xf32, #tpu.memory_space<vmem>>, %arg4: memref<128x128xf32, #tpu.memory_space<vmem>>, %arg5: memref<16x128xf32, #tpu.memory_space<vmem>>) attributes {dimension_semantics = [#tpu.dimension_semantics<parallel>], iteration_bounds = array<i64: 2>, scalar_prefetch = 0 : i64, scratch_operands = 0 : i64, tpu.core_type = #tpu.core_type<tc>, window_params = [{transform_indices = @transform_0, window_bounds = array<i64: 2, 16, 128>}, {pipeline_mode = #tpu.pipeline_mode<synchronous>, transform_indices = @transform_1, window_bounds = array<i64: 128, 128>}, {pipeline_mode = #tpu.pipeline_mode<synchronous>, transform_indices = @transform_2, window_bounds = array<i64: 128, 128>}, {pipeline_mode = #tpu.pipeline_mode<synchronous>, transform_indices = @transform_3, window_bounds = array<i64: 128, 128>}, {transform_indices = @transform_4, window_bounds = array<i64: 16, 128>}]} {
    %c0 = arith.constant 0 : index
    %c0_0 = arith.constant 0 : index
    %c0_1 = arith.constant 0 : index
    %0 = vector.load %arg1[%c0, %c0_0, %c0_1] : memref<2x16x128xf32, #tpu.memory_space<vmem>>, vector<1x16x128xf32>
    %1 = vector.shape_cast %0 : vector<1x16x128xf32> to vector<16x128xf32>
    %c1 = arith.constant 1 : index
    %c0_2 = arith.constant 0 : index
    %c0_3 = arith.constant 0 : index
    %2 = vector.load %arg1[%c1, %c0_2, %c0_3] : memref<2x16x128xf32, #tpu.memory_space<vmem>>, vector<1x16x128xf32>
    %3 = vector.shape_cast %2 : vector<1x16x128xf32> to vector<16x128xf32>
    %4 = arith.maximumf %1, %3 : vector<16x128xf32>
    %c0_4 = arith.constant 0 : index
    %c0_5 = arith.constant 0 : index
    %5 = vector.load %arg2[%c0_4, %c0_5] : memref<128x128xf32, #tpu.memory_space<vmem>>, vector<128x128xf32>
    %cst = arith.constant dense<0.000000e+00> : vector<16x128xf32>
    %6 = tpu.matmul %4, %5, %cst {dimension_numbers = #tpu.dot_dimension_numbers<[1], [0], [0], [1], [0, 0, 1, 1], [], []>} : vector<16x128xf32>, vector<128x128xf32>, vector<16x128xf32> -> vector<16x128xf32>
    %c0_6 = arith.constant 0 : index
    %c0_7 = arith.constant 0 : index
    %7 = vector.load %arg3[%c0_6, %c0_7] : memref<128x128xf32, #tpu.memory_space<vmem>>, vector<128x128xf32>
    %cst_8 = arith.constant dense<0.000000e+00> : vector<16x128xf32>
    %8 = tpu.matmul %6, %7, %cst_8 {dimension_numbers = #tpu.dot_dimension_numbers<[1], [0], [0], [1], [0, 0, 1, 1], [], []>} : vector<16x128xf32>, vector<128x128xf32>, vector<16x128xf32> -> vector<16x128xf32>
    %cst_9 = arith.constant 0.000000e+00 : f32
    %9 = vector.broadcast %cst_9 : f32 to vector<16x128xf32>
    %10 = arith.maximumf %8, %9 : vector<16x128xf32>
    %c0_10 = arith.constant 0 : index
    %c0_11 = arith.constant 0 : index
    %11 = vector.load %arg4[%c0_10, %c0_11] : memref<128x128xf32, #tpu.memory_space<vmem>>, vector<128x128xf32>
    %cst_12 = arith.constant dense<0.000000e+00> : vector<16x128xf32>
    %12 = tpu.matmul %10, %11, %cst_12 {dimension_numbers = #tpu.dot_dimension_numbers<[1], [0], [0], [1], [0, 0, 1, 1], [], []>} : vector<16x128xf32>, vector<128x128xf32>, vector<16x128xf32> -> vector<16x128xf32>
    %c0_13 = arith.constant 0 : index
    %c0_14 = arith.constant 0 : index
    %13 = vector.load %arg5[%c0_13, %c0_14] : memref<16x128xf32, #tpu.memory_space<vmem>>, vector<16x128xf32>
    tpu.vector_store %arg5[%c0_13, %c0_14], %12 {strides = array<i32>} : memref<16x128xf32, #tpu.memory_space<vmem>>, vector<16x128xf32>,
    return
  }
  func.func @transform_0(%arg0: i32) -> (i32, i32, i32) {
    %c0_i32 = arith.constant 0 : i32
    %c0_i32_0 = arith.constant 0 : i32
    %c0_i32_1 = arith.constant 0 : i32
    return %c0_i32, %arg0, %c0_i32_0 : i32, i32, i32
  }
  func.func @transform_1(%arg0: i32) -> (i32, i32) {
    %c0_i32 = arith.constant 0 : i32
    %c0_i32_0 = arith.constant 0 : i32
    %c0_i32_1 = arith.constant 0 : i32
    return %c0_i32, %c0_i32_0 : i32, i32
  }
  func.func @transform_2(%arg0: i32) -> (i32, i32) {
    %c0_i32 = arith.constant 0 : i32
    %c0_i32_0 = arith.constant 0 : i32
    %c0_i32_1 = arith.constant 0 : i32
    return %c0_i32, %c0_i32_0 : i32, i32
  }
  func.func @transform_3(%arg0: i32) -> (i32, i32) {
    %c0_i32 = arith.constant 0 : i32
    %c0_i32_0 = arith.constant 0 : i32
    %c0_i32_1 = arith.constant 0 : i32
    return %c0_i32, %c0_i32_0 : i32, i32
  }
  func.func @transform_4(%arg0: i32) -> (i32, i32) {
    %c0_i32 = arith.constant 0 : i32
    %c0_i32_0 = arith.constant 0 : i32
    return %arg0, %c0_i32 : i32, i32
  }
}

module attributes {stable_mosaic.version = 11 : i64} {
  func.func @kernel(%arg0: i32, %arg1: memref<2x16x128xf32, #tpu.memory_space<vmem>>, %arg2: memref<128x128xf32, #tpu.memory_space<vmem>>, %arg3: memref<128x128xf32, #tpu.memory_space<vmem>>, %arg4: memref<128x128xf32, #tpu.memory_space<vmem>>, %arg5: memref<16x128xf32, #tpu.memory_space<vmem>>) attributes {dimension_semantics = [#tpu.dimension_semantics<parallel>], iteration_bounds = array<i64: 2>, scalar_prefetch = 0 : i64, scratch_operands = 0 : i64, tpu.core_type = #tpu.core_type<tc>, window_params = [{transform_indices = @transform_0, window_bounds = array<i64: 2, 16, 128>}, {pipeline_mode = #tpu.pipeline_mode<synchronous>, transform_indices = @transform_1, window_bounds = array<i64: 128, 128>}, {pipeline_mode = #tpu.pipeline_mode<synchronous>, transform_indices = @transform_2, window_bounds = array<i64: 128, 128>}, {pipeline_mode = #tpu.pipeline_mode<synchronous>, transform_indices = @transform_3, window_bounds = array<i64: 128, 128>}, {transform_indices = @transform_4, window_bounds = array<i64: 16, 128>}]} {
    %c0 = arith.constant 0 : index
    %c0_0 = arith.constant 0 : index
    %c0_1 = arith.constant 0 : index
    %0 = vector.load %arg1[%c0, %c0_0, %c0_1] : memref<2x16x128xf32, #tpu.memory_space<vmem>>, vector<1x16x128xf32>
    %1 = vector.shape_cast %0 : vector<1x16x128xf32> to vector<16x128xf32>
    %c1 = arith.constant 1 : index
    %c0_2 = arith.constant 0 : index
    %c0_3 = arith.constant 0 : index
    %2 = vector.load %arg1[%c1, %c0_2, %c0_3] : memref<2x16x128xf32, #tpu.memory_space<vmem>>, vector<1x16x128xf32>
    %3 = vector.shape_cast %2 : vector<1x16x128xf32> to vector<16x128xf32>
    %4 = arith.maximumf %1, %3 : vector<16x128xf32>
    %c0_4 = arith.constant 0 : index
    %c0_5 = arith.constant 0 : index
    %5 = vector.load %arg2[%c0_4, %c0_5] : memref<128x128xf32, #tpu.memory_space<vmem>>, vector<128x128xf32>
    %cst = arith.constant dense<0.000000e+00> : vector<16x128xf32>
    %6 = tpu.matmul %4, %5, %cst {dimension_numbers = #tpu.dot_dimension_numbers<[1], [0], [0], [1], [0, 0, 1, 1], [], []>} : vector<16x128xf32>, vector<128x128xf32>, vector<16x128xf32> -> vector<16x128xf32>
    %c0_6 = arith.constant 0 : index
    %c0_7 = arith.constant 0 : index
    %7 = vector.load %arg3[%c0_6, %c0_7] : memref<128x128xf32, #tpu.memory_space<vmem>>, vector<128x128xf32>
    %cst_8 = arith.constant dense<0.000000e+00> : vector<16x128xf32>
    %8 = tpu.matmul %6, %7, %cst_8 {dimension_numbers = #tpu.dot_dimension_numbers<[1], [0], [0], [1], [0, 0, 1, 1], [], []>} : vector<16x128xf32>, vector<128x128xf32>, vector<16x128xf32> -> vector<16x128xf32>
    %cst_9 = arith.constant 0.000000e+00 : f32
    %9 = vector.broadcast %cst_9 : f32 to vector<16x128xf32>
    %10 = arith.maximumf %8, %9 : vector<16x128xf32>
    %c0_10 = arith.constant 0 : index
    %c0_11 = arith.constant 0 : index
    %11 = vector.load %arg4[%c0_10, %c0_11] : memref<128x128xf32, #tpu.memory_space<vmem>>, vector<128x128xf32>
    %cst_12 = arith.constant dense<0.000000e+00> : vector<16x128xf32>
    %12 = tpu.matmul %10, %11, %cst_12 {dimension_numbers = #tpu.dot_dimension_numbers<[1], [0], [0], [1], [0, 0, 1, 1], [], []>} : vector<16x128xf32>, vector<128x128xf32>, vector<16x128xf32> -> vector<16x128xf32>
    %c0_13 = arith.constant 0 : index
    %c0_14 = arith.constant 0 : index
    %13 = vector.load %arg5[%c0_13, %c0_14] : memref<16x128xf32, #tpu.memory_space<vmem>>, vector<16x128xf32>
    tpu.vector_store %arg5[%c0_13, %c0_14], %12 {strides = array<i32>} : memref<16x128xf32, #tpu.memory_space<vmem>>, vector<16x128xf32>,
    return
  }
  func.func @transform_0(%arg0: i32) -> (i32, i32, i32) {
    %c0_i32 = arith.constant 0 : i32
    %c0_i32_0 = arith.constant 0 : i32
    %c0_i32_1 = arith.constant 0 : i32
    return %c0_i32, %arg0, %c0_i32_0 : i32, i32, i32
  }
  func.func @transform_1(%arg0: i32) -> (i32, i32) {
    %c0_i32 = arith.constant 0 : i32
    %c0_i32_0 = arith.constant 0 : i32
    %c0_i32_1 = arith.constant 0 : i32
    return %c0_i32, %c0_i32_0 : i32, i32
  }
  func.func @transform_2(%arg0: i32) -> (i32, i32) {
    %c0_i32 = arith.constant 0 : i32
    %c0_i32_0 = arith.constant 0 : i32
    %c0_i32_1 = arith.constant 0 : i32
    return %c0_i32, %c0_i32_0 : i32, i32
  }
  func.func @transform_3(%arg0: i32) -> (i32, i32) {
    %c0_i32 = arith.constant 0 : i32
    %c0_i32_0 = arith.constant 0 : i32
    %c0_i32_1 = arith.constant 0 : i32
    return %c0_i32, %c0_i32_0 : i32, i32
  }
  func.func @transform_4(%arg0: i32) -> (i32, i32) {
    %c0_i32 = arith.constant 0 : i32
    %c0_i32_0 = arith.constant 0 : i32
    return %arg0, %c0_i32 : i32, i32
  }
}

</mosaic_0001>

<llo_original>
// kernel: _forward_impl.1
$region0: #{_forward_impl.1}
  #allocation0 [shape = 'u32[]', space=smem, size = 0x4, offset = 0x4, fixed_abs, tag = 'smem constant byte address 0x4 - core index']
  #allocation1 [shape = 'u32[144,128]{1,0:T(1,128)}', space=vmem, size = 0x12000, scoped, tag = 'internal scratch']
  %s0 = inlined_call_operand.vmem [shape: f32[2,32,128], index: 0, kind: input, shape index: {}]
  %s1 = inlined_call_operand.vmem [shape: f32[128,128], index: 1, kind: input, shape index: {}]
  %s2 = inlined_call_operand.vmem [shape: f32[128,128], index: 2, kind: input, shape index: {}]
  %s3 = inlined_call_operand.vmem [shape: f32[128,128], index: 3, kind: input, shape index: {}]
  %s4 = inlined_call_operand.vmem [shape: f32[32,128], index: 4, kind: output, shape index: {}]
  %s5 = sld [smem:[#allocation0]]
  $region87: #{_forward_impl.1} parent=0
    _
  %s7 = ssub.s32 1, %s5
  %s8 = scalar_select 0, %s7, %s5
  $region1: #{_forward_impl.1} parent=0
    #allocation2 [shape = 'u8[32768]{0}', space=vmem, size = 0x8000, scoped, tag = 'input window, operand 0']
    loop: start=0, step=1, limit=4
    $region2: #{_forward_impl.1} parent=1 // loop_pre_header
      _
    $region3: #{_forward_impl.1} parent=1 // loop_header
      %s10 = sphi 0, %s14
      %p11 = scmp.ge.s32.totalorder %s10, 4
      %s20 = sphi 0, %s22
      %s23 = sphi 0, %s20
      %s24 = sphi 0, %s23
      %s40 = sphi 0, %s24
      %s44 = sphi 0, %s44
      %s46 = sphi 0, %s44
      %s47 = sphi 0, %s46
      %s61 = sphi 0, %s47
      %s65 = sphi 0, %s65
      %s67 = sphi 0, %s65
      %s68 = sphi 0, %s67
      %s82 = sphi 0, %s68
      %s86 = sphi 0, %s86
      %s88 = sphi 0, %s86
      %s89 = sphi 0, %s88
      %s103 = sphi 0, %s89
      %s109 = sphi 0, %s111
      %s112 = sphi 0, %s109
      %s113 = sphi 0, %s112
      %s129 = sphi 0, %s113
    $region4: #{_forward_impl.1} parent=1 // loop_header_branch
      %13 = sbr.rel (%p11) target = $region8
    $region5: #{_forward_impl.1} parent=1 // loop_body
      %s15 = ssub.s32 %s10, 1
      %s16 = ssub.s32 %s10, 2
      %s17 = sadd.s32 %s10, 1
      %s18 = ssub.s32 %s10, %s17
      %p19 = scmp.eq.s32.totalorder %s18, 0
      %s21 = sadd.s32 %s20, 1
      %s22 = scalar_select %p19, %s20, %s21
      %p25 = pneg %p19
      %p26 = scmp.eq.s32.totalorder %s10, 1
      %p27 = por %p25, %p26
      %p28 = scmp.ne.s32.totalorder %s20, %s23
      %p29 = scmp.eq.s32.totalorder %s10, 0
      %p30 = por %p28, %p29
      %p31 = scmp.ne.s32.totalorder %s20, %s23
      %p32 = scmp.eq.s32.totalorder %s15, 1
      %p33 = por %p31, %p32
      %p34 = scmp.ne.s32.totalorder %s23, %s24
      %p35 = scmp.eq.s32.totalorder %s15, 0
      %p36 = por %p34, %p35
      %p37 = scmp.ne.s32.totalorder %s23, %s24
      %p38 = scmp.eq.s32.totalorder %s16, 1
      %p39 = por %p37, %p38
      %p41 = scmp.ne.s32.totalorder %s24, %s40
      %p42 = scmp.eq.s32.totalorder %s16, 0
      %p43 = por %p41, %p42
      %s45 = sadd.s32 %s44, 1
      %p48 = scmp.eq.s32.totalorder %s10, 1
      %p49 = scmp.ne.s32.totalorder %s44, %s46
      %p50 = scmp.eq.s32.totalorder %s10, 0
      %p51 = por %p49, %p50
      %p52 = scmp.ne.s32.totalorder %s44, %s46
      %p53 = scmp.eq.s32.totalorder %s15, 1
      %p54 = por %p52, %p53
      %p55 = scmp.ne.s32.totalorder %s46, %s47
      %p56 = scmp.eq.s32.totalorder %s15, 0
      %p57 = por %p55, %p56
      %p58 = scmp.ne.s32.totalorder %s46, %s47
      %p59 = scmp.eq.s32.totalorder %s16, 1
      %p60 = por %p58, %p59
      %p62 = scmp.ne.s32.totalorder %s47, %s61
      %p63 = scmp.eq.s32.totalorder %s16, 0
      %p64 = por %p62, %p63
      %s66 = sadd.s32 %s65, 1
      %p69 = scmp.eq.s32.totalorder %s10, 1
      %p70 = scmp.ne.s32.totalorder %s65, %s67
      %p71 = scmp.eq.s32.totalorder %s10, 0
      %p72 = por %p70, %p71
      %p73 = scmp.ne.s32.totalorder %s65, %s67
      %p74 = scmp.eq.s32.totalorder %s15, 1
      %p75 = por %p73, %p74
      %p76 = scmp.ne.s32.totalorder %s67, %s68
      %p77 = scmp.eq.s32.totalorder %s15, 0
      %p78 = por %p76, %p77
      %p79 = scmp.ne.s32.totalorder %s67, %s68
      %p80 = scmp.eq.s32.totalorder %s16, 1
      %p81 = por %p79, %p80
      %p83 = scmp.ne.s32.totalorder %s68, %s82
      %p84 = scmp.eq.s32.totalorder %s16, 0
      %p85 = por %p83, %p84
      %s87 = sadd.s32 %s86, 1
      %p90 = scmp.eq.s32.totalorder %s10, 1
      %p91 = scmp.ne.s32.totalorder %s86, %s88
      %p92 = scmp.eq.s32.totalorder %s10, 0
      %p93 = por %p91, %p92
      %p94 = scmp.ne.s32.totalorder %s86, %s88
      %p95 = scmp.eq.s32.totalorder %s15, 1
      %p96 = por %p94, %p95
      %p97 = scmp.ne.s32.totalorder %s88, %s89
      %p98 = scmp.eq.s32.totalorder %s15, 0
      %p99 = por %p97, %p98
      %p100 = scmp.ne.s32.totalorder %s88, %s89
      %p101 = scmp.eq.s32.totalorder %s16, 1
      %p102 = por %p100, %p101
      %p104 = scmp.ne.s32.totalorder %s89, %s103
      %p105 = scmp.eq.s32.totalorder %s16, 0
      %p106 = por %p104, %p105
      %s107 = ssub.s32 %s10, %s17
      %p108 = scmp.eq.s32.totalorder %s107, 0
      %s110 = sadd.s32 %s109, 1
      %s111 = scalar_select %p108, %s109, %s110
      %p114 = pneg %p108
      %p115 = scmp.eq.s32.totalorder %s10, 1
      %p116 = por %p114, %p115
      %p117 = scmp.ne.s32.totalorder %s109, %s112
      %p118 = scmp.eq.s32.totalorder %s10, 0
      %p119 = por %p117, %p118
      %p120 = scmp.ne.s32.totalorder %s109, %s112
      %p121 = scmp.eq.s32.totalorder %s15, 1
      %p122 = por %p120, %p121
      %p123 = scmp.ne.s32.totalorder %s112, %s113
      %p124 = scmp.eq.s32.totalorder %s15, 0
      %p125 = por %p123, %p124
      %p126 = scmp.ne.s32.totalorder %s112, %s113
      %p127 = scmp.eq.s32.totalorder %s16, 1
      %p128 = por %p126, %p127
      %p130 = scmp.ne.s32.totalorder %s113, %s129
      %p131 = scmp.eq.s32.totalorder %s16, 0
      %p132 = por %p130, %p131
      %p133 = scmp.le.s32.totalorder 1, %s10
      %p134 = scmp.lt.s32.totalorder %s10, 3
      %p135 = pnand %p133, %p134
      %p136 = pneg %p135
      // Predicated region
      $region9: #{_forward_impl.1} parent=5 // pred_check
        _
      $region10: #{_forward_impl.1} parent=5 // pred_check_branch
        %138 = sbr.rel (%p135) target = $region12
      $region11: #{_forward_impl.1} parent=5 // pred_region
        %s139 = ssub.s32 %s10, 1
        // Predicated region
        $region13: #{_forward_impl.1} parent=11 // pred_check
          %p140 = pneg %p57
        $region14: #{_forward_impl.1} parent=11 // pred_check_branch
          %142 = sbr.rel (%p140) target = $region16
        $region15: #{_forward_impl.1} parent=11 // pred_region
          _
        $region16: #{_forward_impl.1} parent=11 // pred_fallthru
          _
        // Predicated region
        $region17: #{_forward_impl.1} parent=11 // pred_check
          %p143 = pneg %p78
        $region18: #{_forward_impl.1} parent=11 // pred_check_branch
          %145 = sbr.rel (%p143) target = $region20
        $region19: #{_forward_impl.1} parent=11 // pred_region
          _
        $region20: #{_forward_impl.1} parent=11 // pred_fallthru
          _
        // Predicated region
        $region21: #{_forward_impl.1} parent=11 // pred_check
          %p146 = pneg %p99
        $region22: #{_forward_impl.1} parent=11 // pred_check_branch
          %148 = sbr.rel (%p146) target = $region24
        $region23: #{_forward_impl.1} parent=11 // pred_region
          _
        $region24: #{_forward_impl.1} parent=11 // pred_fallthru
          _
      $region12: #{_forward_impl.1} parent=5 // pred_fallthru
        _
      %p149 = scmp.lt.s32.totalorder %s10, 2
      // Predicated region
      $region25: #{_forward_impl.1} parent=5 // pred_check
        %p150 = pneg %p149
      $region26: #{_forward_impl.1} parent=5 // pred_check_branch
        %152 = sbr.rel (%p150) target = $region28
      $region27: #{_forward_impl.1} parent=5 // pred_region
        // Predicated region
        $region29: #{_forward_impl.1} parent=27 // pred_check
          %p153 = pneg %p30
        $region30: #{_forward_impl.1} parent=27 // pred_check_branch
          %155 = sbr.rel (%p153) target = $region32
        $region31: #{_forward_impl.1} parent=27 // pred_region
          %s156 = sand.u32 %s20, 1
          %s157 = sand.u32 %s20, 1
          %s158 = smul.addr %s157, 32
          %s159 = scalar_lea.vmem [#allocation2], %s158
          %s160 = smul.u32 2, %s10
          %s161 = smul.addr %s160, 8
          %s162 = scalar_lea.vmem %s0, %s161
          // Predicated region
          $region33: #{_forward_impl.1} parent=31 // pred_check
            _
          $region34: #{_forward_impl.1} parent=31 // pred_check_branch
            %164 = sbr.rel (0) target = $region36
          $region35: #{_forward_impl.1} parent=31 // pred_region
            // Predicated region
            $region37: #{_forward_impl.1} parent=35 // pred_check
              _
            $region38: #{_forward_impl.1} parent=35 // pred_check_branch
              %166 = sbr.rel (0) target = $region40
            $region39: #{_forward_impl.1} parent=35 // pred_region
              // Predicated region
              $region52: #{_forward_impl.1} parent=39 // pred_check
                _
              $region53: #{_forward_impl.1} parent=39 // pred_check_branch
                %187 = sbr.rel (0) target = $region55
              $region54: #{_forward_impl.1} parent=39 // pred_region
                loop: start=0, step=1, limit=1
                $region56: #{_forward_impl.1} parent=54 // loop_pre_header
                  _
                $region57: #{_forward_impl.1} parent=54 // loop_header
                  %s189 = sphi 0, %s193
                  %p190 = scmp.ge.s32.totalorder %s189, 1
                  %s194 = sphi %s162, %s162
                  %s195 = sphi %s159, %s159
                $region58: #{_forward_impl.1} parent=54 // loop_header_branch
                  %192 = sbr.rel (%p190) target = $region62
                $region59: #{_forward_impl.1} parent=54 // loop_body
                  %v196 = vld [vmem:[%s194] sm:$0xff]
                  %197 = vst [vmem:[%s195] sm:$0xff] %v196
                  %v198 = vld [vmem:[%s194 + $0x8] sm:$0xff]
                  %199 = vst [vmem:[%s195 + $0x8] sm:$0xff] %v198
                  %v200 = vld [vmem:[%s194 + $0x20] sm:$0xff]
                  %201 = vst [vmem:[%s195 + $0x10] sm:$0xff] %v200
                  %v202 = vld [vmem:[%s194 + $0x28] sm:$0xff]
                  %203 = vst [vmem:[%s195 + $0x18] sm:$0xff] %v202
                $region60: #{_forward_impl.1} parent=54 // loop_footer
                  %s193 = sadd.s32 1, %s189
                $region61: #{_forward_impl.1} parent=54 // loop_footer_branch
                  %188 = sbr.rel target = $region57
                $region62: #{_forward_impl.1} parent=54 // loop_exit
                  _
              $region55: #{_forward_impl.1} parent=39 // pred_fallthru
                _
              // Predicated region
              $region63: #{_forward_impl.1} parent=39 // pred_check
                _
              $region64: #{_forward_impl.1} parent=39 // pred_check_branch
                %205 = sbr.rel target = $region66
              $region65: #{_forward_impl.1} parent=39 // pred_region
                _
              $region66: #{_forward_impl.1} parent=39 // pred_fallthru
                _
            $region40: #{_forward_impl.1} parent=35 // pred_fallthru
              _
            // Predicated region
            $region41: #{_forward_impl.1} parent=35 // pred_check
              _
            $region42: #{_forward_impl.1} parent=35 // pred_check_branch
              %168 = sbr.rel target = $region44
            $region43: #{_forward_impl.1} parent=35 // pred_region
              loop: start=0, step=1, limit=1
              $region45: #{_forward_impl.1} parent=43 // loop_pre_header
                _
              $region46: #{_forward_impl.1} parent=43 // loop_header
                %s171 = sphi 0, %s175
                %p172 = scmp.ge.s32.totalorder %s171, 1
                %s176 = sphi %s162, %s162
                %s177 = sphi %s159, %s159
              $region47: #{_forward_impl.1} parent=43 // loop_header_branch
                %174 = sbr.rel (%p172) target = $region51
              $region48: #{_forward_impl.1} parent=43 // loop_body
                %v178 = vld [vmem:[%s176] sm:$0xff]
                %179 = vst [vmem:[%s177] sm:$0xff] %v178
                %v180 = vld [vmem:[%s176 + $0x8] sm:$0xff]
                %181 = vst [vmem:[%s177 + $0x8] sm:$0xff] %v180
                %v182 = vld [vmem:[%s176 + $0x20] sm:$0xff]
                %183 = vst [vmem:[%s177 + $0x10] sm:$0xff] %v182
                %v184 = vld [vmem:[%s176 + $0x28] sm:$0xff]
                %185 = vst [vmem:[%s177 + $0x18] sm:$0xff] %v184
              $region49: #{_forward_impl.1} parent=43 // loop_footer
                %s175 = sadd.s32 1, %s171
              $region50: #{_forward_impl.1} parent=43 // loop_footer_branch
                %170 = sbr.rel target = $region46
              $region51: #{_forward_impl.1} parent=43 // loop_exit
                _
            $region44: #{_forward_impl.1} parent=35 // pred_fallthru
              _
          $region36: #{_forward_impl.1} parent=31 // pred_fallthru
            _
          %206 = vnop
        $region32: #{_forward_impl.1} parent=27 // pred_fallthru
          _
      $region28: #{_forward_impl.1} parent=5 // pred_fallthru
        _
      %p207 = scmp.le.s32.totalorder 1, %s10
      %p208 = scmp.lt.s32.totalorder %s10, 3
      %p209 = pnand %p207, %p208
      %p210 = pneg %p209
      // Predicated region
      $region67: #{_forward_impl.1} parent=5 // pred_check
        _
      $region68: #{_forward_impl.1} parent=5 // pred_check_branch
        %212 = sbr.rel (%p209) target = $region70
      $region69: #{_forward_impl.1} parent=5 // pred_region
        %s213 = ssub.s32 %s10, 1
        %s214 = sand.u32 %s23, 1
        %s215 = sand.u32 %s23, 1
        %s216 = smul.addr %s215, 32
        %s217 = scalar_lea.vmem [#allocation2], %s216
        // Predicated region
        $region71: #{_forward_impl.1} parent=69 // pred_check
          %p218 = pneg %p36
        $region72: #{_forward_impl.1} parent=69 // pred_check_branch
          %220 = sbr.rel (%p218) target = $region74
        $region73: #{_forward_impl.1} parent=69 // pred_region
          _
        $region74: #{_forward_impl.1} parent=69 // pred_fallthru
          _
        %s221 = sand.u32 %s23, 1
        %s222 = sand.u32 %s23, 1
        %s223 = smul.addr %s222, 32
        %s224 = scalar_lea.vmem [#allocation2], %s223
        %p225 = pneg %p36
        %p226 = pneg %p33
        %p227 = pneg %p57
        %p228 = pneg %p54
        %p229 = pneg %p78
        %p230 = pneg %p75
        %p231 = pneg %p99
        %p232 = pneg %p96
        %p233 = pneg %p125
        %p234 = pneg %p122
        %s235 = smul.u32 2, %s15
        %p236 = scmp.lt.s32.totalorder %s235, 3
        %s237 = scalar_select %p236, %s235, 3
        %s238 = smul.addr %s237, 8
        %s239 = scalar_lea.vmem %s4, %s238
        %s240 = smul.u32 2, %s15
        %s241 = smul.u32 2, %s15
        %p242 = scmp.lt.s32.totalorder %s241, 3
        %s243 = scalar_select %p242, %s241, 3
        %s244 = smul.addr %s243, 8
        %s245 = scalar_lea.vmem %s4, %s244
        %s246 = smul.u32 2, %s15
        %v247 = vld [vmem:[%s217] sm:$0xff]
        %v248 = vld [vmem:[%s217 + $0x8] sm:$0xff]
        %s249 = scalar_lea.vmem %s217, 16 [#allocation2]
        %v250 = vld [vmem:[%s249] sm:$0xff]
        %v251 = vld [vmem:[%s249 + $0x8] sm:$0xff]
        %v252 = vmax.f32 %v247, %v250
        %v253 = vmax.f32 %v248, %v251
        %v254 = vld [vmem:[%s1] sm:$0xff]
        %v255 = vld [vmem:[%s1 + $0x8] sm:$0xff]
        %v256 = vld [vmem:[%s1 + $0x10] sm:$0xff]
        %v257 = vld [vmem:[%s1 + $0x18] sm:$0xff]
        %v258 = vld [vmem:[%s1 + $0x20] sm:$0xff]
        %v259 = vld [vmem:[%s1 + $0x28] sm:$0xff]
        %v260 = vld [vmem:[%s1 + $0x30] sm:$0xff]
        %v261 = vld [vmem:[%s1 + $0x38] sm:$0xff]
        %v262 = vld [vmem:[%s1 + $0x40] sm:$0xff]
        %v263 = vld [vmem:[%s1 + $0x48] sm:$0xff]
        %v264 = vld [vmem:[%s1 + $0x50] sm:$0xff]
        %v265 = vld [vmem:[%s1 + $0x58] sm:$0xff]
        %v266 = vld [vmem:[%s1 + $0x60] sm:$0xff]
        %v267 = vld [vmem:[%s1 + $0x68] sm:$0xff]
        %v268 = vld [vmem:[%s1 + $0x70] sm:$0xff]
        %v269 = vld [vmem:[%s1 + $0x78] sm:$0xff]
        %270 = vmatprep.subr.mxu0 0.0
        %271 = vmatpush1.msra.mxu0 %v254
        %272 = vmatprep.subr.mxu0 0.0
        %273 = vmatpush1.msra.mxu0 %v255
        %274 = vmatprep.subr.mxu0 0.0
        %275 = vmatpush1.msra.mxu0 %v256
        %276 = vmatprep.subr.mxu0 0.0
        %277 = vmatpush1.msra.mxu0 %v257
        %278 = vmatprep.subr.mxu0 0.0
        %279 = vmatpush1.msra.mxu0 %v258
        %280 = vmatprep.subr.mxu0 0.0
        %281 = vmatpush1.msra.mxu0 %v259
        %282 = vmatprep.subr.mxu0 0.0
        %283 = vmatpush1.msra.mxu0 %v260
        %284 = vmatprep.subr.mxu0 0.0
        %285 = vmatpush1.msra.mxu0 %v261
        %286 = vmatprep.subr.mxu0 0.0
        %287 = vmatpush1.msra.mxu0 %v262
        %288 = vmatprep.subr.mxu0 0.0
        %289 = vmatpush1.msra.mxu0 %v263
        %290 = vmatprep.subr.mxu0 0.0
        %291 = vmatpush1.msra.mxu0 %v264
        %292 = vmatprep.subr.mxu0 0.0
        %293 = vmatpush1.msra.mxu0 %v265
        %294 = vmatprep.subr.mxu0 0.0
        %295 = vmatpush1.msra.mxu0 %v266
        %296 = vmatprep.subr.mxu0 0.0
        %297 = vmatpush1.msra.mxu0 %v267
        %298 = vmatprep.subr.mxu0 0.0
        %299 = vmatpush1.msra.mxu0 %v268
        %300 = vmatprep.subr.mxu0 0.0
        %301 = vmatpush1.msra.mxu0 %v269
        %302 = vmatprep.subr.mxu0 0.0
        %303 = vmatpush1.msra.mxu0 0.0
        %304 = vmatprep.subr.mxu0 0.0
        %305 = vmatpush1.msra.mxu0 0.0
        %306 = vmatprep.subr.mxu0 0.0
        %307 = vmatpush1.msra.mxu0 0.0
        %308 = vmatprep.subr.mxu0 0.0
        %309 = vmatpush1.msra.mxu0 0.0
        %310 = vmatprep.subr.mxu0 0.0
        %311 = vmatpush1.msra.mxu0 0.0
        %312 = vmatprep.subr.mxu0 0.0
        %313 = vmatpush1.msra.mxu0 0.0
        %314 = vmatprep.subr.mxu0 0.0
        %315 = vmatpush1.msra.mxu0 0.0
        %316 = vmatprep.subr.mxu0 0.0
        %317 = vmatpush1.msra.mxu0 0.0
        %318 = vmatprep.subr.mxu0 0.0
        %319 = vmatpush1.msra.mxu0 0.0
        %320 = vmatprep.subr.mxu0 0.0
        %321 = vmatpush1.msra.mxu0 0.0
        %322 = vmatprep.subr.mxu0 0.0
        %323 = vmatpush1.msra.mxu0 0.0
        %324 = vmatprep.subr.mxu0 0.0
        %325 = vmatpush1.msra.mxu0 0.0
        %326 = vmatprep.subr.mxu0 0.0
        %327 = vmatpush1.msra.mxu0 0.0
        %328 = vmatprep.subr.mxu0 0.0
        %329 = vmatpush1.msra.mxu0 0.0
        %330 = vmatprep.subr.mxu0 0.0
        %331 = vmatpush1.msra.mxu0 0.0
        %332 = vmatprep.subr.mxu0 0.0
        %333 = vmatpush1.msra.mxu0 0.0
        %334 = vmatprep.mubr.f32.mxu0 0.0
        %335 = vmatmul.mubr.f32.gmra.mrb[0].mxu0 %v252
        %v336 = vpop.f32.mrb[0].mxu0
        %v337 = vadd.f32 0.0, %v336
        %v338 = vpop.f32.mrb[0].mxu0
        %339 = vmatprep.mubr.f32.mxu0 0.0
        %340 = vmatmul.mubr.f32.gmra.mrb[0].mxu0 %v253
        %v341 = vpop.f32.mrb[0].mxu0
        %v342 = vadd.f32 0.0, %v341
        %v343 = vpop.f32.mrb[0].mxu0
        %344 = vdwg.mxu0
        %v345 = vld [vmem:[%s2] sm:$0xff]
        %v346 = vld [vmem:[%s2 + $0x8] sm:$0xff]
        %v347 = vld [vmem:[%s2 + $0x10] sm:$0xff]
        %v348 = vld [vmem:[%s2 + $0x18] sm:$0xff]
        %v349 = vld [vmem:[%s2 + $0x20] sm:$0xff]
        %v350 = vld [vmem:[%s2 + $0x28] sm:$0xff]
        %v351 = vld [vmem:[%s2 + $0x30] sm:$0xff]
        %v352 = vld [vmem:[%s2 + $0x38] sm:$0xff]
        %v353 = vld [vmem:[%s2 + $0x40] sm:$0xff]
        %v354 = vld [vmem:[%s2 + $0x48] sm:$0xff]
        %v355 = vld [vmem:[%s2 + $0x50] sm:$0xff]
        %v356 = vld [vmem:[%s2 + $0x58] sm:$0xff]
        %v357 = vld [vmem:[%s2 + $0x60] sm:$0xff]
        %v358 = vld [vmem:[%s2 + $0x68] sm:$0xff]
        %v359 = vld [vmem:[%s2 + $0x70] sm:$0xff]
        %v360 = vld [vmem:[%s2 + $0x78] sm:$0xff]
        %361 = vmatprep.subr.mxu0 0.0
        %362 = vmatpush1.msra.mxu0 %v345
        %363 = vmatprep.subr.mxu0 0.0
        %364 = vmatpush1.msra.mxu0 %v346
        %365 = vmatprep.subr.mxu0 0.0
        %366 = vmatpush1.msra.mxu0 %v347
        %367 = vmatprep.subr.mxu0 0.0
        %368 = vmatpush1.msra.mxu0 %v348
        %369 = vmatprep.subr.mxu0 0.0
        %370 = vmatpush1.msra.mxu0 %v349
        %371 = vmatprep.subr.mxu0 0.0
        %372 = vmatpush1.msra.mxu0 %v350
        %373 = vmatprep.subr.mxu0 0.0
        %374 = vmatpush1.msra.mxu0 %v351
        %375 = vmatprep.subr.mxu0 0.0
        %376 = vmatpush1.msra.mxu0 %v352
        %377 = vmatprep.subr.mxu0 0.0
        %378 = vmatpush1.msra.mxu0 %v353
        %379 = vmatprep.subr.mxu0 0.0
        %380 = vmatpush1.msra.mxu0 %v354
        %381 = vmatprep.subr.mxu0 0.0
        %382 = vmatpush1.msra.mxu0 %v355
        %383 = vmatprep.subr.mxu0 0.0
        %384 = vmatpush1.msra.mxu0 %v356
        %385 = vmatprep.subr.mxu0 0.0
        %386 = vmatpush1.msra.mxu0 %v357
        %387 = vmatprep.subr.mxu0 0.0
        %388 = vmatpush1.msra.mxu0 %v358
        %389 = vmatprep.subr.mxu0 0.0
        %390 = vmatpush1.msra.mxu0 %v359
        %391 = vmatprep.subr.mxu0 0.0
        %392 = vmatpush1.msra.mxu0 %v360
        %393 = vmatprep.subr.mxu0 0.0
        %394 = vmatpush1.msra.mxu0 0.0
        %395 = vmatprep.subr.mxu0 0.0
        %396 = vmatpush1.msra.mxu0 0.0
        %397 = vmatprep.subr.mxu0 0.0
        %398 = vmatpush1.msra.mxu0 0.0
        %399 = vmatprep.subr.mxu0 0.0
        %400 = vmatpush1.msra.mxu0 0.0
        %401 = vmatprep.subr.mxu0 0.0
        %402 = vmatpush1.msra.mxu0 0.0
        %403 = vmatprep.subr.mxu0 0.0
        %404 = vmatpush1.msra.mxu0 0.0
        %405 = vmatprep.subr.mxu0 0.0
        %406 = vmatpush1.msra.mxu0 0.0
        %407 = vmatprep.subr.mxu0 0.0
        %408 = vmatpush1.msra.mxu0 0.0
        %409 = vmatprep.subr.mxu0 0.0
        %410 = vmatpush1.msra.mxu0 0.0
        %411 = vmatprep.subr.mxu0 0.0
        %412 = vmatpush1.msra.mxu0 0.0
        %413 = vmatprep.subr.mxu0 0.0
        %414 = vmatpush1.msra.mxu0 0.0
        %415 = vmatprep.subr.mxu0 0.0
        %416 = vmatpush1.msra.mxu0 0.0
        %417 = vmatprep.subr.mxu0 0.0
        %418 = vmatpush1.msra.mxu0 0.0
        %419 = vmatprep.subr.mxu0 0.0
        %420 = vmatpush1.msra.mxu0 0.0
        %421 = vmatprep.subr.mxu0 0.0
        %422 = vmatpush1.msra.mxu0 0.0
        %423 = vmatprep.subr.mxu0 0.0
        %424 = vmatpush1.msra.mxu0 0.0
        %425 = vmatprep.mubr.f32.mxu0 0.0
        %426 = vmatmul.mubr.f32.gmra.mrb[0].mxu0 %v337
        %v427 = vpop.f32.mrb[0].mxu0
        %v428 = vadd.f32 0.0, %v427
        %v429 = vpop.f32.mrb[0].mxu0
        %430 = vmatprep.mubr.f32.mxu0 0.0
        %431 = vmatmul.mubr.f32.gmra.mrb[0].mxu0 %v342
        %v432 = vpop.f32.mrb[0].mxu0
        %v433 = vadd.f32 0.0, %v432
        %v434 = vpop.f32.mrb[0].mxu0
        %435 = vdwg.mxu0
        %v436 = vmax.f32 %v428, 0.0
        %v437 = vmax.f32 %v433, 0.0
        %v438 = vld [vmem:[%s3] sm:$0xff]
        %v439 = vld [vmem:[%s3 + $0x8] sm:$0xff]
        %v440 = vld [vmem:[%s3 + $0x10] sm:$0xff]
        %v441 = vld [vmem:[%s3 + $0x18] sm:$0xff]
        %v442 = vld [vmem:[%s3 + $0x20] sm:$0xff]
        %v443 = vld [vmem:[%s3 + $0x28] sm:$0xff]
        %v444 = vld [vmem:[%s3 + $0x30] sm:$0xff]
        %v445 = vld [vmem:[%s3 + $0x38] sm:$0xff]
        %v446 = vld [vmem:[%s3 + $0x40] sm:$0xff]
        %v447 = vld [vmem:[%s3 + $0x48] sm:$0xff]
        %v448 = vld [vmem:[%s3 + $0x50] sm:$0xff]
        %v449 = vld [vmem:[%s3 + $0x58] sm:$0xff]
        %v450 = vld [vmem:[%s3 + $0x60] sm:$0xff]
        %v451 = vld [vmem:[%s3 + $0x68] sm:$0xff]
        %v452 = vld [vmem:[%s3 + $0x70] sm:$0xff]
        %v453 = vld [vmem:[%s3 + $0x78] sm:$0xff]
        %454 = vmatprep.subr.mxu0 0.0
        %455 = vmatpush1.msra.mxu0 %v438
        %456 = vmatprep.subr.mxu0 0.0
        %457 = vmatpush1.msra.mxu0 %v439
        %458 = vmatprep.subr.mxu0 0.0
        %459 = vmatpush1.msra.mxu0 %v440
        %460 = vmatprep.subr.mxu0 0.0
        %461 = vmatpush1.msra.mxu0 %v441
        %462 = vmatprep.subr.mxu0 0.0
        %463 = vmatpush1.msra.mxu0 %v442
        %464 = vmatprep.subr.mxu0 0.0
        %465 = vmatpush1.msra.mxu0 %v443
        %466 = vmatprep.subr.mxu0 0.0
        %467 = vmatpush1.msra.mxu0 %v444
        %468 = vmatprep.subr.mxu0 0.0
        %469 = vmatpush1.msra.mxu0 %v445
        %470 = vmatprep.subr.mxu0 0.0
        %471 = vmatpush1.msra.mxu0 %v446
        %472 = vmatprep.subr.mxu0 0.0
        %473 = vmatpush1.msra.mxu0 %v447
        %474 = vmatprep.subr.mxu0 0.0
        %475 = vmatpush1.msra.mxu0 %v448
        %476 = vmatprep.subr.mxu0 0.0
        %477 = vmatpush1.msra.mxu0 %v449
        %478 = vmatprep.subr.mxu0 0.0
        %479 = vmatpush1.msra.mxu0 %v450
        %480 = vmatprep.subr.mxu0 0.0
        %481 = vmatpush1.msra.mxu0 %v451
        %482 = vmatprep.subr.mxu0 0.0
        %483 = vmatpush1.msra.mxu0 %v452
        %484 = vmatprep.subr.mxu0 0.0
        %485 = vmatpush1.msra.mxu0 %v453
        %486 = vmatprep.subr.mxu0 0.0
        %487 = vmatpush1.msra.mxu0 0.0
        %488 = vmatprep.subr.mxu0 0.0
        %489 = vmatpush1.msra.mxu0 0.0
        %490 = vmatprep.subr.mxu0 0.0
        %491 = vmatpush1.msra.mxu0 0.0
        %492 = vmatprep.subr.mxu0 0.0
        %493 = vmatpush1.msra.mxu0 0.0
        %494 = vmatprep.subr.mxu0 0.0
        %495 = vmatpush1.msra.mxu0 0.0
        %496 = vmatprep.subr.mxu0 0.0
        %497 = vmatpush1.msra.mxu0 0.0
        %498 = vmatprep.subr.mxu0 0.0
        %499 = vmatpush1.msra.mxu0 0.0
        %500 = vmatprep.subr.mxu0 0.0
        %501 = vmatpush1.msra.mxu0 0.0
        %502 = vmatprep.subr.mxu0 0.0
        %503 = vmatpush1.msra.mxu0 0.0
        %504 = vmatprep.subr.mxu0 0.0
        %505 = vmatpush1.msra.mxu0 0.0
        %506 = vmatprep.subr.mxu0 0.0
        %507 = vmatpush1.msra.mxu0 0.0
        %508 = vmatprep.subr.mxu0 0.0
        %509 = vmatpush1.msra.mxu0 0.0
        %510 = vmatprep.subr.mxu0 0.0
        %511 = vmatpush1.msra.mxu0 0.0
        %512 = vmatprep.subr.mxu0 0.0
        %513 = vmatpush1.msra.mxu0 0.0
        %514 = vmatprep.subr.mxu0 0.0
        %515 = vmatpush1.msra.mxu0 0.0
        %516 = vmatprep.subr.mxu0 0.0
        %517 = vmatpush1.msra.mxu0 0.0
        %518 = vmatprep.mubr.f32.mxu0 0.0
        %519 = vmatmul.mubr.f32.gmra.mrb[0].mxu0 %v436
        %v520 = vpop.f32.mrb[0].mxu0
        %v521 = vadd.f32 0.0, %v520
        %v522 = vpop.f32.mrb[0].mxu0
        %523 = vmatprep.mubr.f32.mxu0 0.0
        %524 = vmatmul.mubr.f32.gmra.mrb[0].mxu0 %v437
        %v525 = vpop.f32.mrb[0].mxu0
        %v526 = vadd.f32 0.0, %v525
        %v527 = vpop.f32.mrb[0].mxu0
        %528 = vdwg.mxu0
        %529 = vst [vmem:[%s245] sm:$0xff] %v521
        %530 = vst [vmem:[%s245 + $0x8] sm:$0xff] %v526
        %s531 = smul.u32 2, %s15
        %p532 = scmp.lt.s32.totalorder %s531, 3
        %s533 = scalar_select %p532, %s531, 3
        %s534 = smul.addr %s533, 8
        %s535 = scalar_lea.vmem %s4, %s534
        // Predicated region
        $region75: #{_forward_impl.1} parent=69 // pred_check
          %p536 = pneg %p122
        $region76: #{_forward_impl.1} parent=69 // pred_check_branch
          %538 = sbr.rel (%p536) target = $region78
        $region77: #{_forward_impl.1} parent=69 // pred_region
          %s539 = smul.u32 2, %s15
        $region78: #{_forward_impl.1} parent=69 // pred_fallthru
          _
      $region70: #{_forward_impl.1} parent=5 // pred_fallthru
        _
      %p540 = scmp.le.s32.totalorder 2, %s10
      // Predicated region
      $region79: #{_forward_impl.1} parent=5 // pred_check
        %p541 = pneg %p540
      $region80: #{_forward_impl.1} parent=5 // pred_check_branch
        %543 = sbr.rel (%p541) target = $region82
      $region81: #{_forward_impl.1} parent=5 // pred_region
        %s544 = ssub.s32 %s10, 2
        // Predicated region
        $region83: #{_forward_impl.1} parent=81 // pred_check
          %p545 = pneg %p128
        $region84: #{_forward_impl.1} parent=81 // pred_check_branch
          %547 = sbr.rel (%p545) target = $region86
        $region85: #{_forward_impl.1} parent=81 // pred_region
          %s548 = smul.u32 2, %s16
          %p549 = scmp.lt.s32.totalorder %s548, 3
          %s550 = scalar_select %p549, %s548, 3
          %s551 = smul.addr %s550, 8
          %s552 = scalar_lea.vmem %s4, %s551
        $region86: #{_forward_impl.1} parent=81 // pred_fallthru
          _
      $region82: #{_forward_impl.1} parent=5 // pred_fallthru
        _
    $region6: #{_forward_impl.1} parent=1 // loop_footer
      %s14 = sadd.s32 1, %s10
    $region7: #{_forward_impl.1} parent=1 // loop_footer_branch
      %9 = sbr.rel target = $region3
    $region8: #{_forward_impl.1} parent=1 // loop_exit
      _

// kernel: _forward_impl.1
$region0: #{_forward_impl.1}
  #allocation0 [shape = 'u32[]', space=smem, size = 0x4, offset = 0x4, fixed_abs, tag = 'smem constant byte address 0x4 - core index']
  #allocation1 [shape = 'u32[144,128]{1,0:T(1,128)}', space=vmem, size = 0x12000, scoped, tag = 'internal scratch']
  %s0 = inlined_call_operand.vmem [shape: f32[2,32,128], index: 0, kind: input, shape index: {}]
  %s1 = inlined_call_operand.vmem [shape: f32[128,128], index: 1, kind: input, shape index: {}]
  %s2 = inlined_call_operand.vmem [shape: f32[128,128], index: 2, kind: input, shape index: {}]
  %s3 = inlined_call_operand.vmem [shape: f32[128,128], index: 3, kind: input, shape index: {}]
  %s4 = inlined_call_operand.vmem [shape: f32[32,128], index: 4, kind: output, shape index: {}]
  %s5 = sld [smem:[#allocation0]]
  $region87: #{_forward_impl.1} parent=0
    _
  %s7 = ssub.s32 1, %s5
  %s8 = scalar_select 0, %s7, %s5
  $region1: #{_forward_impl.1} parent=0
    #allocation2 [shape = 'u8[32768]{0}', space=vmem, size = 0x8000, scoped, tag = 'input window, operand 0']
    loop: start=0, step=1, limit=4
    $region2: #{_forward_impl.1} parent=1 // loop_pre_header
      _
    $region3: #{_forward_impl.1} parent=1 // loop_header
      %s10 = sphi 0, %s14
      %p11 = scmp.ge.s32.totalorder %s10, 4
      %s20 = sphi 0, %s22
      %s23 = sphi 0, %s20
      %s24 = sphi 0, %s23
      %s40 = sphi 0, %s24
      %s44 = sphi 0, %s44
      %s46 = sphi 0, %s44
      %s47 = sphi 0, %s46
      %s61 = sphi 0, %s47
      %s65 = sphi 0, %s65
      %s67 = sphi 0, %s65
      %s68 = sphi 0, %s67
      %s82 = sphi 0, %s68
      %s86 = sphi 0, %s86
      %s88 = sphi 0, %s86
      %s89 = sphi 0, %s88
      %s103 = sphi 0, %s89
      %s109 = sphi 0, %s111
      %s112 = sphi 0, %s109
      %s113 = sphi 0, %s112
      %s129 = sphi 0, %s113
    $region4: #{_forward_impl.1} parent=1 // loop_header_branch
      %13 = sbr.rel (%p11) target = $region8
    $region5: #{_forward_impl.1} parent=1 // loop_body
      %s15 = ssub.s32 %s10, 1
      %s16 = ssub.s32 %s10, 2
      %s17 = sadd.s32 %s10, 1
      %s18 = ssub.s32 %s10, %s17
      %p19 = scmp.eq.s32.totalorder %s18, 0
      %s21 = sadd.s32 %s20, 1
      %s22 = scalar_select %p19, %s20, %s21
      %p25 = pneg %p19
      %p26 = scmp.eq.s32.totalorder %s10, 1
      %p27 = por %p25, %p26
      %p28 = scmp.ne.s32.totalorder %s20, %s23
      %p29 = scmp.eq.s32.totalorder %s10, 0
      %p30 = por %p28, %p29
      %p31 = scmp.ne.s32.totalorder %s20, %s23
      %p32 = scmp.eq.s32.totalorder %s15, 1
      %p33 = por %p31, %p32
      %p34 = scmp.ne.s32.totalorder %s23, %s24
      %p35 = scmp.eq.s32.totalorder %s15, 0
      %p36 = por %p34, %p35
      %p37 = scmp.ne.s32.totalorder %s23, %s24
      %p38 = scmp.eq.s32.totalorder %s16, 1
      %p39 = por %p37, %p38
      %p41 = scmp.ne.s32.totalorder %s24, %s40
      %p42 = scmp.eq.s32.totalorder %s16, 0
      %p43 = por %p41, %p42
      %s45 = sadd.s32 %s44, 1
      %p48 = scmp.eq.s32.totalorder %s10, 1
      %p49 = scmp.ne.s32.totalorder %s44, %s46
      %p50 = scmp.eq.s32.totalorder %s10, 0
      %p51 = por %p49, %p50
      %p52 = scmp.ne.s32.totalorder %s44, %s46
      %p53 = scmp.eq.s32.totalorder %s15, 1
      %p54 = por %p52, %p53
      %p55 = scmp.ne.s32.totalorder %s46, %s47
      %p56 = scmp.eq.s32.totalorder %s15, 0
      %p57 = por %p55, %p56
      %p58 = scmp.ne.s32.totalorder %s46, %s47
      %p59 = scmp.eq.s32.totalorder %s16, 1
      %p60 = por %p58, %p59
      %p62 = scmp.ne.s32.totalorder %s47, %s61
      %p63 = scmp.eq.s32.totalorder %s16, 0
      %p64 = por %p62, %p63
      %s66 = sadd.s32 %s65, 1
      %p69 = scmp.eq.s32.totalorder %s10, 1
      %p70 = scmp.ne.s32.totalorder %s65, %s67
      %p71 = scmp.eq.s32.totalorder %s10, 0
      %p72 = por %p70, %p71
      %p73 = scmp.ne.s32.totalorder %s65, %s67
      %p74 = scmp.eq.s32.totalorder %s15, 1
      %p75 = por %p73, %p74
      %p76 = scmp.ne.s32.totalorder %s67, %s68
      %p77 = scmp.eq.s32.totalorder %s15, 0
      %p78 = por %p76, %p77
      %p79 = scmp.ne.s32.totalorder %s67, %s68
      %p80 = scmp.eq.s32.totalorder %s16, 1
      %p81 = por %p79, %p80
      %p83 = scmp.ne.s32.totalorder %s68, %s82
      %p84 = scmp.eq.s32.totalorder %s16, 0
      %p85 = por %p83, %p84
      %s87 = sadd.s32 %s86, 1
      %p90 = scmp.eq.s32.totalorder %s10, 1
      %p91 = scmp.ne.s32.totalorder %s86, %s88
      %p92 = scmp.eq.s32.totalorder %s10, 0
      %p93 = por %p91, %p92
      %p94 = scmp.ne.s32.totalorder %s86, %s88
      %p95 = scmp.eq.s32.totalorder %s15, 1
      %p96 = por %p94, %p95
      %p97 = scmp.ne.s32.totalorder %s88, %s89
      %p98 = scmp.eq.s32.totalorder %s15, 0
      %p99 = por %p97, %p98
      %p100 = scmp.ne.s32.totalorder %s88, %s89
      %p101 = scmp.eq.s32.totalorder %s16, 1
      %p102 = por %p100, %p101
      %p104 = scmp.ne.s32.totalorder %s89, %s103
      %p105 = scmp.eq.s32.totalorder %s16, 0
      %p106 = por %p104, %p105
      %s107 = ssub.s32 %s10, %s17
      %p108 = scmp.eq.s32.totalorder %s107, 0
      %s110 = sadd.s32 %s109, 1
      %s111 = scalar_select %p108, %s109, %s110
      %p114 = pneg %p108
      %p115 = scmp.eq.s32.totalorder %s10, 1
      %p116 = por %p114, %p115
      %p117 = scmp.ne.s32.totalorder %s109, %s112
      %p118 = scmp.eq.s32.totalorder %s10, 0
      %p119 = por %p117, %p118
      %p120 = scmp.ne.s32.totalorder %s109, %s112
      %p121 = scmp.eq.s32.totalorder %s15, 1
      %p122 = por %p120, %p121
      %p123 = scmp.ne.s32.totalorder %s112, %s113
      %p124 = scmp.eq.s32.totalorder %s15, 0
      %p125 = por %p123, %p124
      %p126 = scmp.ne.s32.totalorder %s112, %s113
      %p127 = scmp.eq.s32.totalorder %s16, 1
      %p128 = por %p126, %p127
      %p130 = scmp.ne.s32.totalorder %s113, %s129
      %p131 = scmp.eq.s32.totalorder %s16, 0
      %p132 = por %p130, %p131
      %p133 = scmp.le.s32.totalorder 1, %s10
      %p134 = scmp.lt.s32.totalorder %s10, 3
      %p135 = pnand %p133, %p134
      %p136 = pneg %p135
      // Predicated region
      $region9: #{_forward_impl.1} parent=5 // pred_check
        _
      $region10: #{_forward_impl.1} parent=5 // pred_check_branch
        %138 = sbr.rel (%p135) target = $region12
      $region11: #{_forward_impl.1} parent=5 // pred_region
        %s139 = ssub.s32 %s10, 1
        // Predicated region
        $region13: #{_forward_impl.1} parent=11 // pred_check
          %p140 = pneg %p57
        $region14: #{_forward_impl.1} parent=11 // pred_check_branch
          %142 = sbr.rel (%p140) target = $region16
        $region15: #{_forward_impl.1} parent=11 // pred_region
          _
        $region16: #{_forward_impl.1} parent=11 // pred_fallthru
          _
        // Predicated region
        $region17: #{_forward_impl.1} parent=11 // pred_check
          %p143 = pneg %p78
        $region18: #{_forward_impl.1} parent=11 // pred_check_branch
          %145 = sbr.rel (%p143) target = $region20
        $region19: #{_forward_impl.1} parent=11 // pred_region
          _
        $region20: #{_forward_impl.1} parent=11 // pred_fallthru
          _
        // Predicated region
        $region21: #{_forward_impl.1} parent=11 // pred_check
          %p146 = pneg %p99
        $region22: #{_forward_impl.1} parent=11 // pred_check_branch
          %148 = sbr.rel (%p146) target = $region24
        $region23: #{_forward_impl.1} parent=11 // pred_region
          _
        $region24: #{_forward_impl.1} parent=11 // pred_fallthru
          _
      $region12: #{_forward_impl.1} parent=5 // pred_fallthru
        _
      %p149 = scmp.lt.s32.totalorder %s10, 2
      // Predicated region
      $region25: #{_forward_impl.1} parent=5 // pred_check
        %p150 = pneg %p149
      $region26: #{_forward_impl.1} parent=5 // pred_check_branch
        %152 = sbr.rel (%p150) target = $region28
      $region27: #{_forward_impl.1} parent=5 // pred_region
        // Predicated region
        $region29: #{_forward_impl.1} parent=27 // pred_check
          %p153 = pneg %p30
        $region30: #{_forward_impl.1} parent=27 // pred_check_branch
          %155 = sbr.rel (%p153) target = $region32
        $region31: #{_forward_impl.1} parent=27 // pred_region
          %s156 = sand.u32 %s20, 1
          %s157 = sand.u32 %s20, 1
          %s158 = smul.addr %s157, 32
          %s159 = scalar_lea.vmem [#allocation2], %s158
          %s160 = smul.u32 2, %s10
          %s161 = smul.addr %s160, 8
          %s162 = scalar_lea.vmem %s0, %s161
          // Predicated region
          $region33: #{_forward_impl.1} parent=31 // pred_check
            _
          $region34: #{_forward_impl.1} parent=31 // pred_check_branch
            %164 = sbr.rel (0) target = $region36
          $region35: #{_forward_impl.1} parent=31 // pred_region
            // Predicated region
            $region37: #{_forward_impl.1} parent=35 // pred_check
              _
            $region38: #{_forward_impl.1} parent=35 // pred_check_branch
              %166 = sbr.rel (0) target = $region40
            $region39: #{_forward_impl.1} parent=35 // pred_region
              // Predicated region
              $region52: #{_forward_impl.1} parent=39 // pred_check
                _
              $region53: #{_forward_impl.1} parent=39 // pred_check_branch
                %187 = sbr.rel (0) target = $region55
              $region54: #{_forward_impl.1} parent=39 // pred_region
                loop: start=0, step=1, limit=1
                $region56: #{_forward_impl.1} parent=54 // loop_pre_header
                  _
                $region57: #{_forward_impl.1} parent=54 // loop_header
                  %s189 = sphi 0, %s193
                  %p190 = scmp.ge.s32.totalorder %s189, 1
                  %s194 = sphi %s162, %s162
                  %s195 = sphi %s159, %s159
                $region58: #{_forward_impl.1} parent=54 // loop_header_branch
                  %192 = sbr.rel (%p190) target = $region62
                $region59: #{_forward_impl.1} parent=54 // loop_body
                  %v196 = vld [vmem:[%s194] sm:$0xff]
                  %197 = vst [vmem:[%s195] sm:$0xff] %v196
                  %v198 = vld [vmem:[%s194 + $0x8] sm:$0xff]
                  %199 = vst [vmem:[%s195 + $0x8] sm:$0xff] %v198
                  %v200 = vld [vmem:[%s194 + $0x20] sm:$0xff]
                  %201 = vst [vmem:[%s195 + $0x10] sm:$0xff] %v200
                  %v202 = vld [vmem:[%s194 + $0x28] sm:$0xff]
                  %203 = vst [vmem:[%s195 + $0x18] sm:$0xff] %v202
                $region60: #{_forward_impl.1} parent=54 // loop_footer
                  %s193 = sadd.s32 1, %s189
                $region61: #{_forward_impl.1} parent=54 // loop_footer_branch
                  %188 = sbr.rel target = $region57
                $region62: #{_forward_impl.1} parent=54 // loop_exit
                  _
              $region55: #{_forward_impl.1} parent=39 // pred_fallthru
                _
              // Predicated region
              $region63: #{_forward_impl.1} parent=39 // pred_check
                _
              $region64: #{_forward_impl.1} parent=39 // pred_check_branch
                %205 = sbr.rel target = $region66
              $region65: #{_forward_impl.1} parent=39 // pred_region
                _
              $region66: #{_forward_impl.1} parent=39 // pred_fallthru
                _
            $region40: #{_forward_impl.1} parent=35 // pred_fallthru
              _
            // Predicated region
            $region41: #{_forward_impl.1} parent=35 // pred_check
              _
            $region42: #{_forward_impl.1} parent=35 // pred_check_branch
              %168 = sbr.rel target = $region44
            $region43: #{_forward_impl.1} parent=35 // pred_region
              loop: start=0, step=1, limit=1
              $region45: #{_forward_impl.1} parent=43 // loop_pre_header
                _
              $region46: #{_forward_impl.1} parent=43 // loop_header
                %s171 = sphi 0, %s175
                %p172 = scmp.ge.s32.totalorder %s171, 1
                %s176 = sphi %s162, %s162
                %s177 = sphi %s159, %s159
              $region47: #{_forward_impl.1} parent=43 // loop_header_branch
                %174 = sbr.rel (%p172) target = $region51
              $region48: #{_forward_impl.1} parent=43 // loop_body
                %v178 = vld [vmem:[%s176] sm:$0xff]
                %179 = vst [vmem:[%s177] sm:$0xff] %v178
                %v180 = vld [vmem:[%s176 + $0x8] sm:$0xff]
                %181 = vst [vmem:[%s177 + $0x8] sm:$0xff] %v180
                %v182 = vld [vmem:[%s176 + $0x20] sm:$0xff]
                %183 = vst [vmem:[%s177 + $0x10] sm:$0xff] %v182
                %v184 = vld [vmem:[%s176 + $0x28] sm:$0xff]
                %185 = vst [vmem:[%s177 + $0x18] sm:$0xff] %v184
              $region49: #{_forward_impl.1} parent=43 // loop_footer
                %s175 = sadd.s32 1, %s171
              $region50: #{_forward_impl.1} parent=43 // loop_footer_branch
                %170 = sbr.rel target = $region46
              $region51: #{_forward_impl.1} parent=43 // loop_exit
                _
            $region44: #{_forward_impl.1} parent=35 // pred_fallthru
              _
          $region36: #{_forward_impl.1} parent=31 // pred_fallthru
            _
          %206 = vnop
        $region32: #{_forward_impl.1} parent=27 // pred_fallthru
          _
      $region28: #{_forward_impl.1} parent=5 // pred_fallthru
        _
      %p207 = scmp.le.s32.totalorder 1, %s10
      %p208 = scmp.lt.s32.totalorder %s10, 3
      %p209 = pnand %p207, %p208
      %p210 = pneg %p209
      // Predicated region
      $region67: #{_forward_impl.1} parent=5 // pred_check
        _
      $region68: #{_forward_impl.1} parent=5 // pred_check_branch
        %212 = sbr.rel (%p209) target = $region70
      $region69: #{_forward_impl.1} parent=5 // pred_region
        %s213 = ssub.s32 %s10, 1
        %s214 = sand.u32 %s23, 1
        %s215 = sand.u32 %s23, 1
        %s216 = smul.addr %s215, 32
        %s217 = scalar_lea.vmem [#allocation2], %s216
        // Predicated region
        $region71: #{_forward_impl.1} parent=69 // pred_check
          %p218 = pneg %p36
        $region72: #{_forward_impl.1} parent=69 // pred_check_branch
          %220 = sbr.rel (%p218) target = $region74
        $region73: #{_forward_impl.1} parent=69 // pred_region
          _
        $region74: #{_forward_impl.1} parent=69 // pred_fallthru
          _
        %s221 = sand.u32 %s23, 1
        %s222 = sand.u32 %s23, 1
        %s223 = smul.addr %s222, 32
        %s224 = scalar_lea.vmem [#allocation2], %s223
        %p225 = pneg %p36
        %p226 = pneg %p33
        %p227 = pneg %p57
        %p228 = pneg %p54
        %p229 = pneg %p78
        %p230 = pneg %p75
        %p231 = pneg %p99
        %p232 = pneg %p96
        %p233 = pneg %p125
        %p234 = pneg %p122
        %s235 = smul.u32 2, %s15
        %p236 = scmp.lt.s32.totalorder %s235, 3
        %s237 = scalar_select %p236, %s235, 3
        %s238 = smul.addr %s237, 8
        %s239 = scalar_lea.vmem %s4, %s238
        %s240 = smul.u32 2, %s15
        %s241 = smul.u32 2, %s15
        %p242 = scmp.lt.s32.totalorder %s241, 3
        %s243 = scalar_select %p242, %s241, 3
        %s244 = smul.addr %s243, 8
        %s245 = scalar_lea.vmem %s4, %s244
        %s246 = smul.u32 2, %s15
        %v247 = vld [vmem:[%s217] sm:$0xff]
        %v248 = vld [vmem:[%s217 + $0x8] sm:$0xff]
        %s249 = scalar_lea.vmem %s217, 16 [#allocation2]
        %v250 = vld [vmem:[%s249] sm:$0xff]
        %v251 = vld [vmem:[%s249 + $0x8] sm:$0xff]
        %v252 = vmax.f32 %v247, %v250
        %v253 = vmax.f32 %v248, %v251
        %v254 = vld [vmem:[%s1] sm:$0xff]
        %v255 = vld [vmem:[%s1 + $0x8] sm:$0xff]
        %v256 = vld [vmem:[%s1 + $0x10] sm:$0xff]
        %v257 = vld [vmem:[%s1 + $0x18] sm:$0xff]
        %v258 = vld [vmem:[%s1 + $0x20] sm:$0xff]
        %v259 = vld [vmem:[%s1 + $0x28] sm:$0xff]
        %v260 = vld [vmem:[%s1 + $0x30] sm:$0xff]
        %v261 = vld [vmem:[%s1 + $0x38] sm:$0xff]
        %v262 = vld [vmem:[%s1 + $0x40] sm:$0xff]
        %v263 = vld [vmem:[%s1 + $0x48] sm:$0xff]
        %v264 = vld [vmem:[%s1 + $0x50] sm:$0xff]
        %v265 = vld [vmem:[%s1 + $0x58] sm:$0xff]
        %v266 = vld [vmem:[%s1 + $0x60] sm:$0xff]
        %v267 = vld [vmem:[%s1 + $0x68] sm:$0xff]
        %v268 = vld [vmem:[%s1 + $0x70] sm:$0xff]
        %v269 = vld [vmem:[%s1 + $0x78] sm:$0xff]
        %270 = vmatprep.subr.mxu0 0.0
        %271 = vmatpush1.msra.mxu0 %v254
        %272 = vmatprep.subr.mxu0 0.0
        %273 = vmatpush1.msra.mxu0 %v255
        %274 = vmatprep.subr.mxu0 0.0
        %275 = vmatpush1.msra.mxu0 %v256
        %276 = vmatprep.subr.mxu0 0.0
        %277 = vmatpush1.msra.mxu0 %v257
        %278 = vmatprep.subr.mxu0 0.0
        %279 = vmatpush1.msra.mxu0 %v258
        %280 = vmatprep.subr.mxu0 0.0
        %281 = vmatpush1.msra.mxu0 %v259
        %282 = vmatprep.subr.mxu0 0.0
        %283 = vmatpush1.msra.mxu0 %v260
        %284 = vmatprep.subr.mxu0 0.0
        %285 = vmatpush1.msra.mxu0 %v261
        %286 = vmatprep.subr.mxu0 0.0
        %287 = vmatpush1.msra.mxu0 %v262
        %288 = vmatprep.subr.mxu0 0.0
        %289 = vmatpush1.msra.mxu0 %v263
        %290 = vmatprep.subr.mxu0 0.0
        %291 = vmatpush1.msra.mxu0 %v264
        %292 = vmatprep.subr.mxu0 0.0
        %293 = vmatpush1.msra.mxu0 %v265
        %294 = vmatprep.subr.mxu0 0.0
        %295 = vmatpush1.msra.mxu0 %v266
        %296 = vmatprep.subr.mxu0 0.0
        %297 = vmatpush1.msra.mxu0 %v267
        %298 = vmatprep.subr.mxu0 0.0
        %299 = vmatpush1.msra.mxu0 %v268
        %300 = vmatprep.subr.mxu0 0.0
        %301 = vmatpush1.msra.mxu0 %v269
        %302 = vmatprep.subr.mxu0 0.0
        %303 = vmatpush1.msra.mxu0 0.0
        %304 = vmatprep.subr.mxu0 0.0
        %305 = vmatpush1.msra.mxu0 0.0
        %306 = vmatprep.subr.mxu0 0.0
        %307 = vmatpush1.msra.mxu0 0.0
        %308 = vmatprep.subr.mxu0 0.0
        %309 = vmatpush1.msra.mxu0 0.0
        %310 = vmatprep.subr.mxu0 0.0
        %311 = vmatpush1.msra.mxu0 0.0
        %312 = vmatprep.subr.mxu0 0.0
        %313 = vmatpush1.msra.mxu0 0.0
        %314 = vmatprep.subr.mxu0 0.0
        %315 = vmatpush1.msra.mxu0 0.0
        %316 = vmatprep.subr.mxu0 0.0
        %317 = vmatpush1.msra.mxu0 0.0
        %318 = vmatprep.subr.mxu0 0.0
        %319 = vmatpush1.msra.mxu0 0.0
        %320 = vmatprep.subr.mxu0 0.0
        %321 = vmatpush1.msra.mxu0 0.0
        %322 = vmatprep.subr.mxu0 0.0
        %323 = vmatpush1.msra.mxu0 0.0
        %324 = vmatprep.subr.mxu0 0.0
        %325 = vmatpush1.msra.mxu0 0.0
        %326 = vmatprep.subr.mxu0 0.0
        %327 = vmatpush1.msra.mxu0 0.0
        %328 = vmatprep.subr.mxu0 0.0
        %329 = vmatpush1.msra.mxu0 0.0
        %330 = vmatprep.subr.mxu0 0.0
        %331 = vmatpush1.msra.mxu0 0.0
        %332 = vmatprep.subr.mxu0 0.0
        %333 = vmatpush1.msra.mxu0 0.0
        %334 = vmatprep.mubr.f32.mxu0 0.0
        %335 = vmatmul.mubr.f32.gmra.mrb[0].mxu0 %v252
        %v336 = vpop.f32.mrb[0].mxu0
        %v337 = vadd.f32 0.0, %v336
        %v338 = vpop.f32.mrb[0].mxu0
        %339 = vmatprep.mubr.f32.mxu0 0.0
        %340 = vmatmul.mubr.f32.gmra.mrb[0].mxu0 %v253
        %v341 = vpop.f32.mrb[0].mxu0
        %v342 = vadd.f32 0.0, %v341
        %v343 = vpop.f32.mrb[0].mxu0
        %344 = vdwg.mxu0
        %v345 = vld [vmem:[%s2] sm:$0xff]
        %v346 = vld [vmem:[%s2 + $0x8] sm:$0xff]
        %v347 = vld [vmem:[%s2 + $0x10] sm:$0xff]
        %v348 = vld [vmem:[%s2 + $0x18] sm:$0xff]
        %v349 = vld [vmem:[%s2 + $0x20] sm:$0xff]
        %v350 = vld [vmem:[%s2 + $0x28] sm:$0xff]
        %v351 = vld [vmem:[%s2 + $0x30] sm:$0xff]
        %v352 = vld [vmem:[%s2 + $0x38] sm:$0xff]
        %v353 = vld [vmem:[%s2 + $0x40] sm:$0xff]
        %v354 = vld [vmem:[%s2 + $0x48] sm:$0xff]
        %v355 = vld [vmem:[%s2 + $0x50] sm:$0xff]
        %v356 = vld [vmem:[%s2 + $0x58] sm:$0xff]
        %v357 = vld [vmem:[%s2 + $0x60] sm:$0xff]
        %v358 = vld [vmem:[%s2 + $0x68] sm:$0xff]
        %v359 = vld [vmem:[%s2 + $0x70] sm:$0xff]
        %v360 = vld [vmem:[%s2 + $0x78] sm:$0xff]
        %361 = vmatprep.subr.mxu0 0.0
        %362 = vmatpush1.msra.mxu0 %v345
        %363 = vmatprep.subr.mxu0 0.0
        %364 = vmatpush1.msra.mxu0 %v346
        %365 = vmatprep.subr.mxu0 0.0
        %366 = vmatpush1.msra.mxu0 %v347
        %367 = vmatprep.subr.mxu0 0.0
        %368 = vmatpush1.msra.mxu0 %v348
        %369 = vmatprep.subr.mxu0 0.0
        %370 = vmatpush1.msra.mxu0 %v349
        %371 = vmatprep.subr.mxu0 0.0
        %372 = vmatpush1.msra.mxu0 %v350
        %373 = vmatprep.subr.mxu0 0.0
        %374 = vmatpush1.msra.mxu0 %v351
        %375 = vmatprep.subr.mxu0 0.0
        %376 = vmatpush1.msra.mxu0 %v352
        %377 = vmatprep.subr.mxu0 0.0
        %378 = vmatpush1.msra.mxu0 %v353
        %379 = vmatprep.subr.mxu0 0.0
        %380 = vmatpush1.msra.mxu0 %v354
        %381 = vmatprep.subr.mxu0 0.0
        %382 = vmatpush1.msra.mxu0 %v355
        %383 = vmatprep.subr.mxu0 0.0
        %384 = vmatpush1.msra.mxu0 %v356
        %385 = vmatprep.subr.mxu0 0.0
        %386 = vmatpush1.msra.mxu0 %v357
        %387 = vmatprep.subr.mxu0 0.0
        %388 = vmatpush1.msra.mxu0 %v358
        %389 = vmatprep.subr.mxu0 0.0
        %390 = vmatpush1.msra.mxu0 %v359
        %391 = vmatprep.subr.mxu0 0.0
        %392 = vmatpush1.msra.mxu0 %v360
        %393 = vmatprep.subr.mxu0 0.0
        %394 = vmatpush1.msra.mxu0 0.0
        %395 = vmatprep.subr.mxu0 0.0
        %396 = vmatpush1.msra.mxu0 0.0
        %397 = vmatprep.subr.mxu0 0.0
        %398 = vmatpush1.msra.mxu0 0.0
        %399 = vmatprep.subr.mxu0 0.0
        %400 = vmatpush1.msra.mxu0 0.0
        %401 = vmatprep.subr.mxu0 0.0
        %402 = vmatpush1.msra.mxu0 0.0
        %403 = vmatprep.subr.mxu0 0.0
        %404 = vmatpush1.msra.mxu0 0.0
        %405 = vmatprep.subr.mxu0 0.0
        %406 = vmatpush1.msra.mxu0 0.0
        %407 = vmatprep.subr.mxu0 0.0
        %408 = vmatpush1.msra.mxu0 0.0
        %409 = vmatprep.subr.mxu0 0.0
        %410 = vmatpush1.msra.mxu0 0.0
        %411 = vmatprep.subr.mxu0 0.0
        %412 = vmatpush1.msra.mxu0 0.0
        %413 = vmatprep.subr.mxu0 0.0
        %414 = vmatpush1.msra.mxu0 0.0
        %415 = vmatprep.subr.mxu0 0.0
        %416 = vmatpush1.msra.mxu0 0.0
        %417 = vmatprep.subr.mxu0 0.0
        %418 = vmatpush1.msra.mxu0 0.0
        %419 = vmatprep.subr.mxu0 0.0
        %420 = vmatpush1.msra.mxu0 0.0
        %421 = vmatprep.subr.mxu0 0.0
        %422 = vmatpush1.msra.mxu0 0.0
        %423 = vmatprep.subr.mxu0 0.0
        %424 = vmatpush1.msra.mxu0 0.0
        %425 = vmatprep.mubr.f32.mxu0 0.0
        %426 = vmatmul.mubr.f32.gmra.mrb[0].mxu0 %v337
        %v427 = vpop.f32.mrb[0].mxu0
        %v428 = vadd.f32 0.0, %v427
        %v429 = vpop.f32.mrb[0].mxu0
        %430 = vmatprep.mubr.f32.mxu0 0.0
        %431 = vmatmul.mubr.f32.gmra.mrb[0].mxu0 %v342
        %v432 = vpop.f32.mrb[0].mxu0
        %v433 = vadd.f32 0.0, %v432
        %v434 = vpop.f32.mrb[0].mxu0
        %435 = vdwg.mxu0
        %v436 = vmax.f32 %v428, 0.0
        %v437 = vmax.f32 %v433, 0.0
        %v438 = vld [vmem:[%s3] sm:$0xff]
        %v439 = vld [vmem:[%s3 + $0x8] sm:$0xff]
        %v440 = vld [vmem:[%s3 + $0x10] sm:$0xff]
        %v441 = vld [vmem:[%s3 + $0x18] sm:$0xff]
        %v442 = vld [vmem:[%s3 + $0x20] sm:$0xff]
        %v443 = vld [vmem:[%s3 + $0x28] sm:$0xff]
        %v444 = vld [vmem:[%s3 + $0x30] sm:$0xff]
        %v445 = vld [vmem:[%s3 + $0x38] sm:$0xff]
        %v446 = vld [vmem:[%s3 + $0x40] sm:$0xff]
        %v447 = vld [vmem:[%s3 + $0x48] sm:$0xff]
        %v448 = vld [vmem:[%s3 + $0x50] sm:$0xff]
        %v449 = vld [vmem:[%s3 + $0x58] sm:$0xff]
        %v450 = vld [vmem:[%s3 + $0x60] sm:$0xff]
        %v451 = vld [vmem:[%s3 + $0x68] sm:$0xff]
        %v452 = vld [vmem:[%s3 + $0x70] sm:$0xff]
        %v453 = vld [vmem:[%s3 + $0x78] sm:$0xff]
        %454 = vmatprep.subr.mxu0 0.0
        %455 = vmatpush1.msra.mxu0 %v438
        %456 = vmatprep.subr.mxu0 0.0
        %457 = vmatpush1.msra.mxu0 %v439
        %458 = vmatprep.subr.mxu0 0.0
        %459 = vmatpush1.msra.mxu0 %v440
        %460 = vmatprep.subr.mxu0 0.0
        %461 = vmatpush1.msra.mxu0 %v441
        %462 = vmatprep.subr.mxu0 0.0
        %463 = vmatpush1.msra.mxu0 %v442
        %464 = vmatprep.subr.mxu0 0.0
        %465 = vmatpush1.msra.mxu0 %v443
        %466 = vmatprep.subr.mxu0 0.0
        %467 = vmatpush1.msra.mxu0 %v444
        %468 = vmatprep.subr.mxu0 0.0
        %469 = vmatpush1.msra.mxu0 %v445
        %470 = vmatprep.subr.mxu0 0.0
        %471 = vmatpush1.msra.mxu0 %v446
        %472 = vmatprep.subr.mxu0 0.0
        %473 = vmatpush1.msra.mxu0 %v447
        %474 = vmatprep.subr.mxu0 0.0
        %475 = vmatpush1.msra.mxu0 %v448
        %476 = vmatprep.subr.mxu0 0.0
        %477 = vmatpush1.msra.mxu0 %v449
        %478 = vmatprep.subr.mxu0 0.0
        %479 = vmatpush1.msra.mxu0 %v450
        %480 = vmatprep.subr.mxu0 0.0
        %481 = vmatpush1.msra.mxu0 %v451
        %482 = vmatprep.subr.mxu0 0.0
        %483 = vmatpush1.msra.mxu0 %v452
        %484 = vmatprep.subr.mxu0 0.0
        %485 = vmatpush1.msra.mxu0 %v453
        %486 = vmatprep.subr.mxu0 0.0
        %487 = vmatpush1.msra.mxu0 0.0
        %488 = vmatprep.subr.mxu0 0.0
        %489 = vmatpush1.msra.mxu0 0.0
        %490 = vmatprep.subr.mxu0 0.0
        %491 = vmatpush1.msra.mxu0 0.0
        %492 = vmatprep.subr.mxu0 0.0
        %493 = vmatpush1.msra.mxu0 0.0
        %494 = vmatprep.subr.mxu0 0.0
        %495 = vmatpush1.msra.mxu0 0.0
        %496 = vmatprep.subr.mxu0 0.0
        %497 = vmatpush1.msra.mxu0 0.0
        %498 = vmatprep.subr.mxu0 0.0
        %499 = vmatpush1.msra.mxu0 0.0
        %500 = vmatprep.subr.mxu0 0.0
        %501 = vmatpush1.msra.mxu0 0.0
        %502 = vmatprep.subr.mxu0 0.0
        %503 = vmatpush1.msra.mxu0 0.0
        %504 = vmatprep.subr.mxu0 0.0
        %505 = vmatpush1.msra.mxu0 0.0
        %506 = vmatprep.subr.mxu0 0.0
        %507 = vmatpush1.msra.mxu0 0.0
        %508 = vmatprep.subr.mxu0 0.0
        %509 = vmatpush1.msra.mxu0 0.0
        %510 = vmatprep.subr.mxu0 0.0
        %511 = vmatpush1.msra.mxu0 0.0
        %512 = vmatprep.subr.mxu0 0.0
        %513 = vmatpush1.msra.mxu0 0.0
        %514 = vmatprep.subr.mxu0 0.0
        %515 = vmatpush1.msra.mxu0 0.0
        %516 = vmatprep.subr.mxu0 0.0
        %517 = vmatpush1.msra.mxu0 0.0
        %518 = vmatprep.mubr.f32.mxu0 0.0
        %519 = vmatmul.mubr.f32.gmra.mrb[0].mxu0 %v436
        %v520 = vpop.f32.mrb[0].mxu0
        %v521 = vadd.f32 0.0, %v520
        %v522 = vpop.f32.mrb[0].mxu0
        %523 = vmatprep.mubr.f32.mxu0 0.0
        %524 = vmatmul.mubr.f32.gmra.mrb[0].mxu0 %v437
        %v525 = vpop.f32.mrb[0].mxu0
        %v526 = vadd.f32 0.0, %v525
        %v527 = vpop.f32.mrb[0].mxu0
        %528 = vdwg.mxu0
        %529 = vst [vmem:[%s245] sm:$0xff] %v521
        %530 = vst [vmem:[%s245 + $0x8] sm:$0xff] %v526
        %s531 = smul.u32 2, %s15
        %p532 = scmp.lt.s32.totalorder %s531, 3
        %s533 = scalar_select %p532, %s531, 3
        %s534 = smul.addr %s533, 8
        %s535 = scalar_lea.vmem %s4, %s534
        // Predicated region
        $region75: #{_forward_impl.1} parent=69 // pred_check
          %p536 = pneg %p122
        $region76: #{_forward_impl.1} parent=69 // pred_check_branch
          %538 = sbr.rel (%p536) target = $region78
        $region77: #{_forward_impl.1} parent=69 // pred_region
          %s539 = smul.u32 2, %s15
        $region78: #{_forward_impl.1} parent=69 // pred_fallthru
          _
      $region70: #{_forward_impl.1} parent=5 // pred_fallthru
        _
      %p540 = scmp.le.s32.totalorder 2, %s10
      // Predicated region
      $region79: #{_forward_impl.1} parent=5 // pred_check
        %p541 = pneg %p540
      $region80: #{_forward_impl.1} parent=5 // pred_check_branch
        %543 = sbr.rel (%p541) target = $region82
      $region81: #{_forward_impl.1} parent=5 // pred_region
        %s544 = ssub.s32 %s10, 2
        // Predicated region
        $region83: #{_forward_impl.1} parent=81 // pred_check
          %p545 = pneg %p128
        $region84: #{_forward_impl.1} parent=81 // pred_check_branch
          %547 = sbr.rel (%p545) target = $region86
        $region85: #{_forward_impl.1} parent=81 // pred_region
          %s548 = smul.u32 2, %s16
          %p549 = scmp.lt.s32.totalorder %s548, 3
          %s550 = scalar_select %p549, %s548, 3
          %s551 = smul.addr %s550, 8
          %s552 = scalar_lea.vmem %s4, %s551
        $region86: #{_forward_impl.1} parent=81 // pred_fallthru
          _
      $region82: #{_forward_impl.1} parent=5 // pred_fallthru
        _
    $region6: #{_forward_impl.1} parent=1 // loop_footer
      %s14 = sadd.s32 1, %s10
    $region7: #{_forward_impl.1} parent=1 // loop_footer_branch
      %9 = sbr.rel target = $region3
    $region8: #{_forward_impl.1} parent=1 // loop_exit
      _

</llo_original>
